<compile_context>
chip_gen: v6e
topology: v6e:2x2x1
jax: 0.10.0
libtpu: 0.0.40
codegen_flags: <defaults>
</compile_context>

<pallas_src>
import math
import functools

import jax
import jax.numpy as jnp
from jax import lax
from jax.experimental import pallas as pl
from jax.experimental.pallas import tpu as pltpu

_NEG = -1e30  # large finite negative: behaves like -inf in softmax, never NaNs


# --------------------------------------------------------------------------- #
# Kernel
# --------------------------------------------------------------------------- #
def _encoder_kernel(nhead, head_dim, eps, mm_dtype, seq_len, batch_tile,
                    x_ref,      # [Tb*S, D]   embedded + pos-encoded activations (f32)
                    kpm_ref,    # [B, S]      additive key-padding bias (0 / -1e30), full
                    wqkv_ref,   # [D, 3D]     fused QKV weight (q-scale folded in), mm_dtype
                    bqkv_ref,   # [1, 3D]     fused QKV bias   (q-scale folded in), f32
                    wo_ref,     # [D, D]      attention output projection, mm_dtype
                    vec_ref,    # [6, D]      bo, ln1_g, ln1_b, b2, ln2_g, ln2_b (f32)
                    w1_ref,     # [D, d_hid]  mm_dtype
                    b1_ref,     # [1, d_hid]  f32
                    w2_ref,     # [d_hid, D]  mm_dtype
                    o_ref,      # [Tb*S, D]   f32
                    qkv_ref,    # scratch VMEM [Tb*S, 3D] mm_dtype
                    ctx_ref):   # scratch VMEM [Tb*S, D]  mm_dtype
    S, Tb = seq_len, batch_tile
    D = x_ref.shape[-1]
    H, hd = nhead, head_dim

    def mm(a, b):       # a @ b on the MXU, f32 accumulation
        return jnp.dot(a.astype(mm_dtype), b.astype(mm_dtype),
                       preferred_element_type=jnp.float32)

    def mm_nt(a, b):    # a @ b.T without materializing the transpose
        return lax.dot_general(a.astype(mm_dtype), b.astype(mm_dtype),
                               (((1,), (1,)), ((), ())),
                               preferred_element_type=jnp.float32)

    x = x_ref[...]                                           # [Tb*S, D] f32

    # ---- fused QKV projection: one full-width matmul, biases added once.
    # Stored in the matmul dtype so the per-head re-reads need no casts. ----
    qkv_ref[...] = (mm(x, wqkv_ref[...]) + bqkv_ref[...]).astype(qkv_ref.dtype)

    # ---- causal mask built in-kernel (no [S,S] HBM traffic), hoisted ----
    row = lax.broadcasted_iota(jnp.int32, (S, S), 0)
    col = lax.broadcasted_iota(jnp.int32, (S, S), 1)
    causal = jnp.where(col > row, _NEG, 0.0).astype(jnp.float32)

    base = pl.program_id(0) * Tb                              # global batch offset

    # ---- attention: fori-style loop over batch rows bounds vreg liveness ----
    @pl.loop(0, Tb)
    def _(b):
        r0 = pl.multiple_of(b * S, S)                         # sublane-aligned (S % 8 == 0)
        bias_b = causal + kpm_ref[pl.ds(base + b, 1), :]      # [S,S] + [1,S], once per row
        heads = []
        for h in range(H):                                    # static, small
            c0 = h * hd
            q_h = qkv_ref[pl.ds(r0, S), c0:c0 + hd]                     # [S, hd]
            k_h = qkv_ref[pl.ds(r0, S), D + c0:D + c0 + hd]             # [S, hd]
            v_h = qkv_ref[pl.ds(r0, S), 2 * D + c0:2 * D + c0 + hd]     # [S, hd]

            s = mm_nt(q_h, k_h) + bias_b                                # [S, S] f32
            s = s - jnp.max(s, axis=-1, keepdims=True)
            p = jnp.exp(s)
            p = p * pl.reciprocal(jnp.sum(p, axis=-1, keepdims=True), approx=True)
            heads.append(mm(p, v_h))                                    # [S, hd] f32
        # one unmasked, lane-dense [S, D] store per batch row (no per-head vst.msk)
        ctx_ref[pl.ds(r0, S), :] = jnp.concatenate(heads, axis=-1).astype(ctx_ref.dtype)

    bo, g1, be1, b2, g2, be2 = (vec_ref[i:i + 1] for i in range(6))     # each [1, D]

    # ---- single full-width output projection ----
    attn = mm(ctx_ref[...], wo_ref[...]) + bo

    # ---- residual + LayerNorm 1 (dropout = identity, eval mode) ----
    h1 = x + attn
    mu1 = jnp.mean(h1, axis=-1, keepdims=True)
    var1 = jnp.mean((h1 - mu1) ** 2, axis=-1, keepdims=True)
    h1n = (h1 - mu1) * lax.rsqrt(var1 + eps) * g1 + be1

    # ---- feed-forward (ReLU) ----
    f = jnp.maximum(mm(h1n, w1_ref[...]) + b1_ref[...], 0.0)
    f = mm(f, w2_ref[...]) + b2

    # ---- residual + LayerNorm 2 ----
    h2 = h1n + f
    mu2 = jnp.mean(h2, axis=-1, keepdims=True)
    var2 = jnp.mean((h2 - mu2) ** 2, axis=-1, keepdims=True)
    o_ref[...] = (h2 - mu2) * lax.rsqrt(var2 + eps) * g2 + be2


# --------------------------------------------------------------------------- #
# Parameters / glue
# --------------------------------------------------------------------------- #
def _build_positional_encoding(max_len, d_model):
    position = jnp.arange(max_len, dtype=jnp.float32)[:, None]
    div_term = jnp.exp(jnp.arange(0, d_model, 2, dtype=jnp.float32)
                       * (-math.log(10000.0) / d_model))
    pe = jnp.zeros((max_len, d_model), jnp.float32)
    pe = pe.at[:, 0::2].set(jnp.sin(position * div_term))
    pe = pe.at[:, 1::2].set(jnp.cos(position * div_term))
    return pe


def init_params(key, ntoken, d_model, nhead, d_hid, max_len=64):
    D, H = d_model, nhead
    hd = D // H
    scale = 1.0 / math.sqrt(hd)
    ks = jax.random.split(key, 10)
    std = 0.05

    emb = jax.random.normal(ks[0], (ntoken, D), jnp.float32)

    # PyTorch stores in_proj_weight as [3D, D] (out, in); convert to x@W layout.
    in_proj_w = jax.random.normal(ks[1], (3 * D, D), jnp.float32) * std
    in_proj_b = jax.random.normal(ks[2], (3 * D,), jnp.float32) * std
    wq_t, wk_t, wv_t = (in_proj_w[i * D:(i + 1) * D].T for i in range(3))   # [D, D]
    bq, bk, bv = (in_proj_b[i * D:(i + 1) * D] for i in range(3))           # [D]

    # Fold 1/sqrt(hd) query scale into Wq/bq, then fuse QKV into one [D, 3D].
    wqkv = jnp.concatenate([wq_t * scale, wk_t, wv_t], axis=1)              # [D, 3D]
    bqkv = jnp.concatenate([bq * scale, bk, bv])[None, :]                   # [1, 3D]

    out_proj_w = jax.random.normal(ks[3], (D, D), jnp.float32) * std        # (out, in)
    out_proj_b = jax.random.normal(ks[4], (D,), jnp.float32) * std
    wo = out_proj_w.T                                                       # [D, D] x@W

    w1 = (jax.random.normal(ks[5], (d_hid, D), jnp.float32) * std).T        # [D, d_hid]
    b1 = jax.random.normal(ks[6], (d_hid,), jnp.float32) * std
    w2 = (jax.random.normal(ks[7], (D, d_hid), jnp.float32) * std).T        # [d_hid, D]
    b2 = jax.random.normal(ks[8], (D,), jnp.float32) * std

    ln1_g = jnp.ones((D,), jnp.float32)
    ln1_b = jnp.zeros((D,), jnp.float32)
    ln2_g = jnp.ones((D,), jnp.float32)
    ln2_b = jnp.zeros((D,), jnp.float32)

    # Pack all [D]-sized vector params into one [6, D] array (one DMA, not six).
    vecs = jnp.stack([out_proj_b, ln1_g, ln1_b, b2, ln2_g, ln2_b], axis=0)

    return {
        "emb": emb, "pe": _build_positional_encoding(max_len, D),
        "wqkv": wqkv, "bqkv": bqkv, "wo": wo, "vecs": vecs,
        "w1": w1, "b1": b1[None, :], "w2": w2,
    }


def _vmem_capacity_bytes():
    try:
        cap = int(pltpu.get_tpu_info().vmem_capacity_bytes)
        if cap > 0:
            return cap
    except Exception:
        pass
    return 64 * 1024 * 1024  # conservative (v7x per-TC)


def _pick_batch_tile(B, S, D, mm_itemsize, vmem_budget):
    """VMEM-budgeted, MXU-aware batch-tile picker.

    Picks the biggest divisor Tb of B whose per-step working set fits the
    budget; prefers Tb*S to be a multiple of the native MXU M dim (256, else
    128) and, when that holds, keeps >= 2 grid steps for megacore sharding.
    """
    if B <= 1:
        return 1

    def tile_bytes(tb):
        rows = tb * S
        io = 2 * 2 * rows * D * 4                       # x + out, double-buffered, f32
        scratch = rows * (3 * D + D) * mm_itemsize      # qkv + ctx scratch
        return io + scratch

    divisors = [d for d in range(1, B + 1) if B % d == 0]
    budget = max(vmem_budget, tile_bytes(1))            # always keep one legal option
    fitting = [d for d in divisors if tile_bytes(d) <= budget]
    for m in (256, 128):                                # MXU-native M (v6e/v7x, v5e)
        pref = [d for d in fitting if (d * S) % m == 0]
        if pref:
            multi = [d for d in pref if d < B]          # >= 2 grid steps if free
            return max(multi) if multi else max(pref)
    return max(fitting)


def mini_gpt2_forward(src, params, *, d_model, nhead, pad_idx,
                      batch_tile=None, matmul_dtype=jnp.bfloat16):
    B, S = src.shape
    D = d_model
    hd = D // nhead
    d_hid = params["w1"].shape[1]

    # ---- glue in plain JAX: embedding gather, scaling, positional encoding ----
    x = params["emb"][src] * math.sqrt(D)                  # [B, S, D]
    x = x + params["pe"][:B][:, None, :]                   # reproduces pe[:x.size(0)]
    x2d = x.reshape(B * S, D)                              # lane-dense 2-D slab

    # tiny additive key-padding bias [B, S]; causal part built in-kernel
    kpm = jnp.where(src == pad_idx, _NEG, 0.0).astype(jnp.float32)

    # weights fed to the MXU in matmul_dtype (f32 accumulation in-kernel)
    wqkv = params["wqkv"].astype(matmul_dtype)
    wo = params["wo"].astype(matmul_dtype)
    w1 = params["w1"].astype(matmul_dtype)
    w2 = params["w2"].astype(matmul_dtype)
    bqkv, vecs, b1 = params["bqkv"], params["vecs"], params["b1"]

    mm_itemsize = jnp.dtype(matmul_dtype).itemsize
    weight_bytes = ((wqkv.size + wo.size + w1.size + w2.size) * mm_itemsize
                    + (bqkv.size + vecs.size + b1.size + kpm.size) * 4)

    vmem_limit = min(_vmem_capacity_bytes() * 7 // 8, 128 << 20)

    if batch_tile is None:
        budget = vmem_limit - 2 * weight_bytes - (2 << 20)   # worst-case dbl-buffered weights
        batch_tile = _pick_batch_tile(B, S, D, mm_itemsize, budget)
    assert B % batch_tile == 0
    Tb = batch_tile

    kernel = functools.partial(_encoder_kernel, nhead, hd, 1e-5, matmul_dtype, S, Tb)

    flops = (2 * B * S * D * 3 * D            # fused QKV
             + 4 * B * nhead * S * S * hd     # scores + ctx
             + 2 * B * S * D * D              # output projection
             + 4 * B * S * D * d_hid)         # FFN
    cost = pl.CostEstimate(
        flops=int(flops),
        transcendentals=int(B * nhead * S * S),
        bytes_accessed=int(2 * x2d.size * 4 + weight_bytes),
    )

    def call(single_buffer_weights):
        wkw = {"pipeline_mode": pl.Buffered(1)} if single_buffer_weights else {}

        def wspec(r, c):                      # constant-index (weight-like) block
            return pl.BlockSpec((r, c), lambda b: (0, 0), **wkw)

        in_specs = [
            pl.BlockSpec((Tb * S, D), lambda b: (b, 0)),        # x (flattened rows)
            wspec(B, S),                                        # key-pad bias (full, tiny)
            wspec(D, 3 * D), wspec(1, 3 * D),                   # wqkv, bqkv
            wspec(D, D), wspec(6, D),                           # wo, packed vec params
            wspec(D, d_hid), wspec(1, d_hid), wspec(d_hid, D),  # w1, b1, w2
        ]
        return pl.pallas_call(
            kernel,
            out_shape=jax.ShapeDtypeStruct((B * S, D), jnp.float32),
            grid_spec=pltpu.PrefetchScalarGridSpec(
                num_scalar_prefetch=0,
                grid=(B // Tb,),
                in_specs=in_specs,
                out_specs=pl.BlockSpec((Tb * S, D), lambda b: (b, 0)),
                scratch_shapes=[
                    pltpu.VMEM((Tb * S, 3 * D), matmul_dtype),  # fused QKV
                    pltpu.VMEM((Tb * S, D), matmul_dtype),      # stacked head outputs
                ],
            ),
            compiler_params=pltpu.CompilerParams(
                dimension_semantics=("parallel",),
                vmem_limit_bytes=int(vmem_limit),
            ),
            cost_estimate=cost,
        )(x2d, kpm, wqkv, bqkv, wo, vecs, w1, b1, w2)

    try:
        out2d = call(single_buffer_weights=True)
    except Exception:
        # pl.Buffered(1) not supported by this JAX version -> default buffering.
        out2d = call(single_buffer_weights=False)

    return out2d.reshape(B, S, D)


# --------------------------------------------------------------------------- #
# Pure-JAX reference (same fused params), for the sanity check in __main__
# --------------------------------------------------------------------------- #
def _reference_forward(src, params, *, d_model, nhead, pad_idx):
    B, S = src.shape
    D = d_model
    hd = D // nhead
    x = params["emb"][src] * math.sqrt(D)
    x = x + params["pe"][:B][:, None, :]

    qkv = x @ params["wqkv"] + params["bqkv"][0]
    q, k, v = qkv[..., :D], qkv[..., D:2 * D], qkv[..., 2 * D:]
    q = q.reshape(B, S, nhead, hd).transpose(0, 2, 1, 3)
    k = k.reshape(B, S, nhead, hd).transpose(0, 2, 1, 3)
    v = v.reshape(B, S, nhead, hd).transpose(0, 2, 1, 3)

    causal = jnp.where(jnp.arange(S)[None, :] > jnp.arange(S)[:, None], _NEG, 0.0)
    keypad = jnp.where(src == pad_idx, _NEG, 0.0)
    bias = causal[None, None] + keypad[:, None, None, :]

    s = jnp.einsum("bhqd,bhkd->bhqk", q, k) + bias
    p = jax.nn.softmax(s, axis=-1)
    ctx = jnp.einsum("bhqk,bhkd->bhqd", p, v).transpose(0, 2, 1, 3).reshape(B, S, D)

    bo, g1, be1, b2, g2, be2 = params["vecs"]
    attn = ctx @ params["wo"] + bo

    h1 = x + attn
    h1n = ((h1 - h1.mean(-1, keepdims=True))
           / jnp.sqrt(h1.var(-1, keepdims=True) + 1e-5)) * g1 + be1
    f = jax.nn.relu(h1n @ params["w1"] + params["b1"][0]) @ params["w2"] + b2
    h2 = h1n + f
    return ((h2 - h2.mean(-1, keepdims=True))
            / jnp.sqrt(h2.var(-1, keepdims=True) + 1e-5)) * g2 + be2


# --------------------------------------------------------------------------- #
if __name__ == "__main__":
    ntoken, d_model, nhead, d_hid, pad_idx = 16, 32, 4, 64, 0
    B, S = 2, 8

    key = jax.random.PRNGKey(0)
    kp, kt = jax.random.split(key)
    params = init_params(kp, ntoken, d_model, nhead, d_hid)

    src = jax.random.randint(kt, (B, S), 1, ntoken)
    src = src.at[0, -2:].set(pad_idx)   # exercise the key-padding mask path

    ref = _reference_forward(src, params, d_model=d_model, nhead=nhead, pad_idx=pad_idx)

    # Default path: bf16 MXU feeds, f32 accumulation, bf16 scratch.
    out = mini_gpt2_forward(src, params, d_model=d_model, nhead=nhead, pad_idx=pad_idx)
    jax.block_until_ready(out)
    assert out.shape == (B, S, d_model)
    assert bool(jnp.all(jnp.isfinite(out)))
    err_bf16 = float(jnp.max(jnp.abs(out - ref)))
    assert err_bf16 < 2e-1, f"bf16 path mismatch vs reference: {err_bf16}"

    # f32 debug path (tight tolerance).
    out32 = mini_gpt2_forward(src, params, d_model=d_model, nhead=nhead,
                              pad_idx=pad_idx, matmul_dtype=jnp.float32)
    jax.block_until_ready(out32)
    err_f32 = float(jnp.max(jnp.abs(out32 - ref)))
    assert err_f32 < 5e-2, f"f32 path mismatch vs reference: {err_f32}"

    print("KERNEL_OK")
</pallas_src>

<mosaic_0001>
module attributes {stable_mosaic.version = 11 : i64} {
  func.func @_encoder_kernel(%arg0: i32, %arg1: memref<16x32xf32, #tpu.memory_space<vmem>>, %arg2: memref<2x8xf32, #tpu.memory_space<vmem>>, %arg3: memref<32x96xbf16, #tpu.memory_space<vmem>>, %arg4: memref<1x96xf32, #tpu.memory_space<vmem>>, %arg5: memref<32x32xbf16, #tpu.memory_space<vmem>>, %arg6: memref<6x32xf32, #tpu.memory_space<vmem>>, %arg7: memref<32x64xbf16, #tpu.memory_space<vmem>>, %arg8: memref<1x64xf32, #tpu.memory_space<vmem>>, %arg9: memref<64x32xbf16, #tpu.memory_space<vmem>>, %arg10: memref<16x32xf32, #tpu.memory_space<vmem>>, %arg11: memref<16x96xbf16, #tpu.memory_space<vmem>>, %arg12: memref<16x32xbf16, #tpu.memory_space<vmem>>) attributes {dimension_semantics = [#tpu.dimension_semantics<parallel>], iteration_bounds = array<i64: 1>, scalar_prefetch = 0 : i64, scratch_operands = 2 : i64, tpu.core_type = #tpu.core_type<tc>, window_params = [{transform_indices = @transform_0, window_bounds = array<i64: 16, 32>}, {pipeline_mode = #tpu.pipeline_mode<synchronous>, transform_indices = @transform_1, window_bounds = array<i64: 2, 8>}, {pipeline_mode = #tpu.pipeline_mode<synchronous>, transform_indices = @transform_2, window_bounds = array<i64: 32, 96>}, {pipeline_mode = #tpu.pipeline_mode<synchronous>, transform_indices = @transform_3, window_bounds = array<i64: 1, 96>}, {pipeline_mode = #tpu.pipeline_mode<synchronous>, transform_indices = @transform_4, window_bounds = array<i64: 32, 32>}, {pipeline_mode = #tpu.pipeline_mode<synchronous>, transform_indices = @transform_5, window_bounds = array<i64: 6, 32>}, {pipeline_mode = #tpu.pipeline_mode<synchronous>, transform_indices = @transform_6, window_bounds = array<i64: 32, 64>}, {pipeline_mode = #tpu.pipeline_mode<synchronous>, transform_indices = @transform_7, window_bounds = array<i64: 1, 64>}, {pipeline_mode = #tpu.pipeline_mode<synchronous>, transform_indices = @transform_8, window_bounds = array<i64: 64, 32>}, {transform_indices = @transform_9, window_bounds = array<i64: 16, 32>}]} {
    %c0 = arith.constant 0 : index
    %c0_0 = arith.constant 0 : index
    %0 = vector.load %arg1[%c0, %c0_0] : memref<16x32xf32, #tpu.memory_space<vmem>>, vector<16x32xf32>
    %c0_1 = arith.constant 0 : index
    %c0_2 = arith.constant 0 : index
    %1 = vector.load %arg3[%c0_1, %c0_2] : memref<32x96xbf16, #tpu.memory_space<vmem>>, vector<32x96xbf16>
    %2 = arith.truncf %0 : vector<16x32xf32> to vector<16x32xbf16>
    %cst = arith.constant dense<0.000000e+00> : vector<16x96xf32>
    %3 = tpu.matmul %2, %1, %cst {dimension_numbers = #tpu.dot_dimension_numbers<[1], [0], [0], [1], [0, 0, 1, 1], [], []>} : vector<16x32xbf16>, vector<32x96xbf16>, vector<16x96xf32> -> vector<16x96xf32>
    %c0_3 = arith.constant 0 : index
    %c0_4 = arith.constant 0 : index
    %4 = vector.load %arg4[%c0_3, %c0_4] : memref<1x96xf32, #tpu.memory_space<vmem>>, vector<1x96xf32>
    %5 = vector.broadcast %4 : vector<1x96xf32> to vector<16x96xf32>
    %6 = arith.addf %3, %5 : vector<16x96xf32>
    %7 = arith.truncf %6 : vector<16x96xf32> to vector<16x96xbf16>
    %c0_5 = arith.constant 0 : index
    %c0_6 = arith.constant 0 : index
    %8 = vector.load %arg11[%c0_5, %c0_6] : memref<16x96xbf16, #tpu.memory_space<vmem>>, vector<16x96xbf16>
    tpu.vector_store %arg11[%c0_5, %c0_6], %7 {strides = array<i32>} : memref<16x96xbf16, #tpu.memory_space<vmem>>, vector<16x96xbf16>,
    %9 = tpu.iota {dimensions = array<i32: 0>} : vector<8x8xi32>
    %10 = tpu.iota {dimensions = array<i32: 1>} : vector<8x8xi32>
    %11 = arith.cmpi sgt, %10, %9 : vector<8x8xi32>
    %cst_7 = arith.constant -1.000000e+30 : f32
    %cst_8 = arith.constant 0.000000e+00 : f32
    %12 = vector.broadcast %cst_7 : f32 to vector<8x8xf32>
    %13 = vector.broadcast %cst_8 : f32 to vector<8x8xf32>
    %14 = arith.select %11, %12, %13 : vector<8x8xi1>, vector<8x8xf32>
    %c2_i32 = arith.constant 2 : i32
    %15 = arith.muli %arg0, %c2_i32 : i32
    %c0_i32 = arith.constant 0 : i32
    %c2_i32_9 = arith.constant 2 : i32
    %16 = arith.addi %c0_i32, %c2_i32_9 : i32
    %c1_i32 = arith.constant 1 : i32
    scf.for %arg13 = %c0_i32 to %16 step %c1_i32  : i32 {
      %c1_i32_44 = arith.constant 1 : i32
      %88 = arith.muli %arg13, %c1_i32_44 : i32
      %c0_i32_45 = arith.constant 0 : i32
      %89 = arith.addi %c0_i32_45, %88 : i32
      %c8_i32 = arith.constant 8 : i32
      %90 = arith.muli %89, %c8_i32 : i32
      %91 = tpu.assume_multiple %90, 8 : i32
      %92 = arith.addi %15, %89 : i32
      %93 = arith.index_cast %92 : i32 to index
      %c0_46 = arith.constant 0 : index
      %94 = vector.load %arg2[%93, %c0_46] : memref<2x8xf32, #tpu.memory_space<vmem>>, vector<1x8xf32>
      %95 = vector.broadcast %94 : vector<1x8xf32> to vector<8x8xf32>
      %96 = arith.addf %14, %95 : vector<8x8xf32>
      %97 = arith.index_cast %91 : i32 to index
      %c0_47 = arith.constant 0 : index
      %98 = vector.load %arg11[%97, %c0_47] : memref<16x96xbf16, #tpu.memory_space<vmem>>, vector<8x8xbf16>
      %99 = arith.index_cast %91 : i32 to index
      %c32 = arith.constant 32 : index
      %100 = vector.load %arg11[%99, %c32] : memref<16x96xbf16, #tpu.memory_space<vmem>>, vector<8x8xbf16>
      %101 = arith.index_cast %91 : i32 to index
      %c64 = arith.constant 64 : index
      %102 = vector.load %arg11[%101, %c64] : memref<16x96xbf16, #tpu.memory_space<vmem>>, vector<8x8xbf16>
      %cst_48 = arith.constant dense<0.000000e+00> : vector<8x8xf32>
      %103 = tpu.matmul %98, %100, %cst_48 {dimension_numbers = #tpu.dot_dimension_numbers<[1], [1], [0], [0], [0, 0, 1, 0], [], []>} : vector<8x8xbf16>, vector<8x8xbf16>, vector<8x8xf32> -> vector<8x8xf32>
      %104 = arith.addf %103, %96 : vector<8x8xf32>
      %cst_49 = arith.constant dense<0xFF800000> : vector<8xf32>
      %105 = vector.multi_reduction <maximumf>, %104, %cst_49 [1] : vector<8x8xf32> to vector<8xf32>
      %106 = vector.shape_cast %105 : vector<8xf32> to vector<8x1xf32>
      %107 = vector.broadcast %106 : vector<8x1xf32> to vector<8x8xf32>
      %108 = arith.subf %104, %107 : vector<8x8xf32>
      %109 = math.exp %108 : vector<8x8xf32>
      %cst_50 = arith.constant dense<0.000000e+00> : vector<8xf32>
      %110 = vector.multi_reduction <add>, %109, %cst_50 [1] : vector<8x8xf32> to vector<8xf32>
      %111 = vector.shape_cast %110 : vector<8xf32> to vector<8x1xf32>
      %112 = tpu.reciprocal %111 {approx = true} : vector<8x1xf32> -> vector<8x1xf32>
      %113 = vector.broadcast %112 : vector<8x1xf32> to vector<8x8xf32>
      %114 = arith.mulf %109, %113 : vector<8x8xf32>
      %115 = arith.truncf %114 : vector<8x8xf32> to vector<8x8xbf16>
      %cst_51 = arith.constant dense<0.000000e+00> : vector<8x8xf32>
      %116 = tpu.matmul %115, %102, %cst_51 {dimension_numbers = #tpu.dot_dimension_numbers<[1], [0], [0], [1], [0, 0, 1, 1], [], []>} : vector<8x8xbf16>, vector<8x8xbf16>, vector<8x8xf32> -> vector<8x8xf32>
      %117 = arith.index_cast %91 : i32 to index
      %c8 = arith.constant 8 : index
      %118 = vector.load %arg11[%117, %c8] : memref<16x96xbf16, #tpu.memory_space<vmem>>, vector<8x8xbf16>
      %119 = arith.index_cast %91 : i32 to index
      %c40 = arith.constant 40 : index
      %120 = vector.load %arg11[%119, %c40] : memref<16x96xbf16, #tpu.memory_space<vmem>>, vector<8x8xbf16>
      %121 = arith.index_cast %91 : i32 to index
      %c72 = arith.constant 72 : index
      %122 = vector.load %arg11[%121, %c72] : memref<16x96xbf16, #tpu.memory_space<vmem>>, vector<8x8xbf16>
      %cst_52 = arith.constant dense<0.000000e+00> : vector<8x8xf32>
      %123 = tpu.matmul %118, %120, %cst_52 {dimension_numbers = #tpu.dot_dimension_numbers<[1], [1], [0], [0], [0, 0, 1, 0], [], []>} : vector<8x8xbf16>, vector<8x8xbf16>, vector<8x8xf32> -> vector<8x8xf32>
      %124 = arith.addf %123, %96 : vector<8x8xf32>
      %cst_53 = arith.constant dense<0xFF800000> : vector<8xf32>
      %125 = vector.multi_reduction <maximumf>, %124, %cst_53 [1] : vector<8x8xf32> to vector<8xf32>
      %126 = vector.shape_cast %125 : vector<8xf32> to vector<8x1xf32>
      %127 = vector.broadcast %126 : vector<8x1xf32> to vector<8x8xf32>
      %128 = arith.subf %124, %127 : vector<8x8xf32>
      %129 = math.exp %128 : vector<8x8xf32>
      %cst_54 = arith.constant dense<0.000000e+00> : vector<8xf32>
      %130 = vector.multi_reduction <add>, %129, %cst_54 [1] : vector<8x8xf32> to vector<8xf32>
      %131 = vector.shape_cast %130 : vector<8xf32> to vector<8x1xf32>
      %132 = tpu.reciprocal %131 {approx = true} : vector<8x1xf32> -> vector<8x1xf32>
      %133 = vector.broadcast %132 : vector<8x1xf32> to vector<8x8xf32>
      %134 = arith.mulf %129, %133 : vector<8x8xf32>
      %135 = arith.truncf %134 : vector<8x8xf32> to vector<8x8xbf16>
      %cst_55 = arith.constant dense<0.000000e+00> : vector<8x8xf32>
      %136 = tpu.matmul %135, %122, %cst_55 {dimension_numbers = #tpu.dot_dimension_numbers<[1], [0], [0], [1], [0, 0, 1, 1], [], []>} : vector<8x8xbf16>, vector<8x8xbf16>, vector<8x8xf32> -> vector<8x8xf32>
      %137 = arith.index_cast %91 : i32 to index
      %c16 = arith.constant 16 : index
      %138 = vector.load %arg11[%137, %c16] : memref<16x96xbf16, #tpu.memory_space<vmem>>, vector<8x8xbf16>
      %139 = arith.index_cast %91 : i32 to index
      %c48 = arith.constant 48 : index
      %140 = vector.load %arg11[%139, %c48] : memref<16x96xbf16, #tpu.memory_space<vmem>>, vector<8x8xbf16>
      %141 = arith.index_cast %91 : i32 to index
      %c80 = arith.constant 80 : index
      %142 = vector.load %arg11[%141, %c80] : memref<16x96xbf16, #tpu.memory_space<vmem>>, vector<8x8xbf16>
      %cst_56 = arith.constant dense<0.000000e+00> : vector<8x8xf32>
      %143 = tpu.matmul %138, %140, %cst_56 {dimension_numbers = #tpu.dot_dimension_numbers<[1], [1], [0], [0], [0, 0, 1, 0], [], []>} : vector<8x8xbf16>, vector<8x8xbf16>, vector<8x8xf32> -> vector<8x8xf32>
      %144 = arith.addf %143, %96 : vector<8x8xf32>
      %cst_57 = arith.constant dense<0xFF800000> : vector<8xf32>
      %145 = vector.multi_reduction <maximumf>, %144, %cst_57 [1] : vector<8x8xf32> to vector<8xf32>
      %146 = vector.shape_cast %145 : vector<8xf32> to vector<8x1xf32>
      %147 = vector.broadcast %146 : vector<8x1xf32> to vector<8x8xf32>
      %148 = arith.subf %144, %147 : vector<8x8xf32>
      %149 = math.exp %148 : vector<8x8xf32>
      %cst_58 = arith.constant dense<0.000000e+00> : vector<8xf32>
      %150 = vector.multi_reduction <add>, %149, %cst_58 [1] : vector<8x8xf32> to vector<8xf32>
      %151 = vector.shape_cast %150 : vector<8xf32> to vector<8x1xf32>
      %152 = tpu.reciprocal %151 {approx = true} : vector<8x1xf32> -> vector<8x1xf32>
      %153 = vector.broadcast %152 : vector<8x1xf32> to vector<8x8xf32>
      %154 = arith.mulf %149, %153 : vector<8x8xf32>
      %155 = arith.truncf %154 : vector<8x8xf32> to vector<8x8xbf16>
      %cst_59 = arith.constant dense<0.000000e+00> : vector<8x8xf32>
      %156 = tpu.matmul %155, %142, %cst_59 {dimension_numbers = #tpu.dot_dimension_numbers<[1], [0], [0], [1], [0, 0, 1, 1], [], []>} : vector<8x8xbf16>, vector<8x8xbf16>, vector<8x8xf32> -> vector<8x8xf32>
      %157 = arith.index_cast %91 : i32 to index
      %c24 = arith.constant 24 : index
      %158 = vector.load %arg11[%157, %c24] : memref<16x96xbf16, #tpu.memory_space<vmem>>, vector<8x8xbf16>
      %159 = arith.index_cast %91 : i32 to index
      %c56 = arith.constant 56 : index
      %160 = vector.load %arg11[%159, %c56] : memref<16x96xbf16, #tpu.memory_space<vmem>>, vector<8x8xbf16>
      %161 = arith.index_cast %91 : i32 to index
      %c88 = arith.constant 88 : index
      %162 = vector.load %arg11[%161, %c88] : memref<16x96xbf16, #tpu.memory_space<vmem>>, vector<8x8xbf16>
      %cst_60 = arith.constant dense<0.000000e+00> : vector<8x8xf32>
      %163 = tpu.matmul %158, %160, %cst_60 {dimension_numbers = #tpu.dot_dimension_numbers<[1], [1], [0], [0], [0, 0, 1, 0], [], []>} : vector<8x8xbf16>, vector<8x8xbf16>, vector<8x8xf32> -> vector<8x8xf32>
      %164 = arith.addf %163, %96 : vector<8x8xf32>
      %cst_61 = arith.constant dense<0xFF800000> : vector<8xf32>
      %165 = vector.multi_reduction <maximumf>, %164, %cst_61 [1] : vector<8x8xf32> to vector<8xf32>
      %166 = vector.shape_cast %165 : vector<8xf32> to vector<8x1xf32>
      %167 = vector.broadcast %166 : vector<8x1xf32> to vector<8x8xf32>
      %168 = arith.subf %164, %167 : vector<8x8xf32>
      %169 = math.exp %168 : vector<8x8xf32>
      %cst_62 = arith.constant dense<0.000000e+00> : vector<8xf32>
      %170 = vector.multi_reduction <add>, %169, %cst_62 [1] : vector<8x8xf32> to vector<8xf32>
      %171 = vector.shape_cast %170 : vector<8xf32> to vector<8x1xf32>
      %172 = tpu.reciprocal %171 {approx = true} : vector<8x1xf32> -> vector<8x1xf32>
      %173 = vector.broadcast %172 : vector<8x1xf32> to vector<8x8xf32>
      %174 = arith.mulf %169, %173 : vector<8x8xf32>
      %175 = arith.truncf %174 : vector<8x8xf32> to vector<8x8xbf16>
      %cst_63 = arith.constant dense<0.000000e+00> : vector<8x8xf32>
      %176 = tpu.matmul %175, %162, %cst_63 {dimension_numbers = #tpu.dot_dimension_numbers<[1], [0], [0], [1], [0, 0, 1, 1], [], []>} : vector<8x8xbf16>, vector<8x8xbf16>, vector<8x8xf32> -> vector<8x8xf32>
      %177 = tpu.concatenate %116, %136, %156, %176 in 1 : vector<8x8xf32>, vector<8x8xf32>, vector<8x8xf32>, vector<8x8xf32> -> vector<8x32xf32>
      %178 = arith.truncf %177 : vector<8x32xf32> to vector<8x32xbf16>
      %179 = arith.index_cast %91 : i32 to index
      %c0_64 = arith.constant 0 : index
      %180 = vector.load %arg12[%179, %c0_64] : memref<16x32xbf16, #tpu.memory_space<vmem>>, vector<8x32xbf16>
      tpu.vector_store %arg12[%179, %c0_64], %178 {strides = array<i32>} : memref<16x32xbf16, #tpu.memory_space<vmem>>, vector<8x32xbf16>,
    }
    %c2_i32_10 = arith.constant 2 : i32
    %c0_11 = arith.constant 0 : index
    %c0_12 = arith.constant 0 : index
    %17 = vector.load %arg6[%c0_11, %c0_12] : memref<6x32xf32, #tpu.memory_space<vmem>>, vector<1x32xf32>
    %c1 = arith.constant 1 : index
    %c0_13 = arith.constant 0 : index
    %18 = vector.load %arg6[%c1, %c0_13] : memref<6x32xf32, #tpu.memory_space<vmem>>, vector<1x32xf32>
    %c2 = arith.constant 2 : index
    %c0_14 = arith.constant 0 : index
    %19 = vector.load %arg6[%c2, %c0_14] : memref<6x32xf32, #tpu.memory_space<vmem>>, vector<1x32xf32>
    %c3 = arith.constant 3 : index
    %c0_15 = arith.constant 0 : index
    %20 = vector.load %arg6[%c3, %c0_15] : memref<6x32xf32, #tpu.memory_space<vmem>>, vector<1x32xf32>
    %c4 = arith.constant 4 : index
    %c0_16 = arith.constant 0 : index
    %21 = vector.load %arg6[%c4, %c0_16] : memref<6x32xf32, #tpu.memory_space<vmem>>, vector<1x32xf32>
    %c5 = arith.constant 5 : index
    %c0_17 = arith.constant 0 : index
    %22 = vector.load %arg6[%c5, %c0_17] : memref<6x32xf32, #tpu.memory_space<vmem>>, vector<1x32xf32>
    %c0_18 = arith.constant 0 : index
    %c0_19 = arith.constant 0 : index
    %23 = vector.load %arg12[%c0_18, %c0_19] : memref<16x32xbf16, #tpu.memory_space<vmem>>, vector<16x32xbf16>
    %c0_20 = arith.constant 0 : index
    %c0_21 = arith.constant 0 : index
    %24 = vector.load %arg5[%c0_20, %c0_21] : memref<32x32xbf16, #tpu.memory_space<vmem>>, vector<32x32xbf16>
    %cst_22 = arith.constant dense<0.000000e+00> : vector<16x32xf32>
    %25 = tpu.matmul %23, %24, %cst_22 {dimension_numbers = #tpu.dot_dimension_numbers<[1], [0], [0], [1], [0, 0, 1, 1], [], []>} : vector<16x32xbf16>, vector<32x32xbf16>, vector<16x32xf32> -> vector<16x32xf32>
    %26 = vector.broadcast %17 : vector<1x32xf32> to vector<16x32xf32>
    %27 = arith.addf %25, %26 : vector<16x32xf32>
    %28 = arith.addf %0, %27 : vector<16x32xf32>
    %cst_23 = arith.constant dense<0.000000e+00> : vector<16xf32>
    %29 = vector.multi_reduction <add>, %28, %cst_23 [1] : vector<16x32xf32> to vector<16xf32>
    %30 = vector.shape_cast %29 : vector<16xf32> to vector<16x1xf32>
    %cst_24 = arith.constant 3.200000e+01 : f32
    %31 = vector.broadcast %cst_24 : f32 to vector<16x1xf32>
    %32 = arith.divf %30, %31 : vector<16x1xf32>
    %33 = vector.broadcast %32 : vector<16x1xf32> to vector<16x32xf32>
    %34 = arith.subf %28, %33 : vector<16x32xf32>
    %35 = arith.mulf %34, %34 : vector<16x32xf32>
    %cst_25 = arith.constant dense<0.000000e+00> : vector<16xf32>
    %36 = vector.multi_reduction <add>, %35, %cst_25 [1] : vector<16x32xf32> to vector<16xf32>
    %37 = vector.shape_cast %36 : vector<16xf32> to vector<16x1xf32>
    %cst_26 = arith.constant 3.200000e+01 : f32
    %38 = vector.broadcast %cst_26 : f32 to vector<16x1xf32>
    %39 = arith.divf %37, %38 : vector<16x1xf32>
    %40 = vector.broadcast %32 : vector<16x1xf32> to vector<16x32xf32>
    %41 = arith.subf %28, %40 : vector<16x32xf32>
    %cst_27 = arith.constant 9.99999974E-6 : f32
    %42 = vector.broadcast %cst_27 : f32 to vector<16x1xf32>
    %43 = arith.addf %39, %42 : vector<16x1xf32>
    %44 = math.rsqrt %43 : vector<16x1xf32>
    %45 = vector.broadcast %44 : vector<16x1xf32> to vector<16x32xf32>
    %46 = arith.mulf %41, %45 : vector<16x32xf32>
    %47 = vector.broadcast %18 : vector<1x32xf32> to vector<16x32xf32>
    %48 = arith.mulf %46, %47 : vector<16x32xf32>
    %49 = vector.broadcast %19 : vector<1x32xf32> to vector<16x32xf32>
    %50 = arith.addf %48, %49 : vector<16x32xf32>
    %c0_28 = arith.constant 0 : index
    %c0_29 = arith.constant 0 : index
    %51 = vector.load %arg7[%c0_28, %c0_29] : memref<32x64xbf16, #tpu.memory_space<vmem>>, vector<32x64xbf16>
    %52 = arith.truncf %50 : vector<16x32xf32> to vector<16x32xbf16>
    %cst_30 = arith.constant dense<0.000000e+00> : vector<16x64xf32>
    %53 = tpu.matmul %52, %51, %cst_30 {dimension_numbers = #tpu.dot_dimension_numbers<[1], [0], [0], [1], [0, 0, 1, 1], [], []>} : vector<16x32xbf16>, vector<32x64xbf16>, vector<16x64xf32> -> vector<16x64xf32>
    %c0_31 = arith.constant 0 : index
    %c0_32 = arith.constant 0 : index
    %54 = vector.load %arg8[%c0_31, %c0_32] : memref<1x64xf32, #tpu.memory_space<vmem>>, vector<1x64xf32>
    %55 = vector.broadcast %54 : vector<1x64xf32> to vector<16x64xf32>
    %56 = arith.addf %53, %55 : vector<16x64xf32>
    %cst_33 = arith.constant 0.000000e+00 : f32
    %57 = vector.broadcast %cst_33 : f32 to vector<16x64xf32>
    %58 = arith.maximumf %56, %57 : vector<16x64xf32>
    %c0_34 = arith.constant 0 : index
    %c0_35 = arith.constant 0 : index
    %59 = vector.load %arg9[%c0_34, %c0_35] : memref<64x32xbf16, #tpu.memory_space<vmem>>, vector<64x32xbf16>
    %60 = arith.truncf %58 : vector<16x64xf32> to vector<16x64xbf16>
    %cst_36 = arith.constant dense<0.000000e+00> : vector<16x32xf32>
    %61 = tpu.matmul %60, %59, %cst_36 {dimension_numbers = #tpu.dot_dimension_numbers<[1], [0], [0], [1], [0, 0, 1, 1], [], []>} : vector<16x64xbf16>, vector<64x32xbf16>, vector<16x32xf32> -> vector<16x32xf32>
    %62 = vector.broadcast %20 : vector<1x32xf32> to vector<16x32xf32>
    %63 = arith.addf %61, %62 : vector<16x32xf32>
    %64 = arith.addf %50, %63 : vector<16x32xf32>
    %cst_37 = arith.constant dense<0.000000e+00> : vector<16xf32>
    %65 = vector.multi_reduction <add>, %64, %cst_37 [1] : vector<16x32xf32> to vector<16xf32>
    %66 = vector.shape_cast %65 : vector<16xf32> to vector<16x1xf32>
    %cst_38 = arith.constant 3.200000e+01 : f32
    %67 = vector.broadcast %cst_38 : f32 to vector<16x1xf32>
    %68 = arith.divf %66, %67 : vector<16x1xf32>
    %69 = vector.broadcast %68 : vector<16x1xf32> to vector<16x32xf32>
    %70 = arith.subf %64, %69 : vector<16x32xf32>
    %71 = arith.mulf %70, %70 : vector<16x32xf32>
    %cst_39 = arith.constant dense<0.000000e+00> : vector<16xf32>
    %72 = vector.multi_reduction <add>, %71, %cst_39 [1] : vector<16x32xf32> to vector<16xf32>
    %73 = vector.shape_cast %72 : vector<16xf32> to vector<16x1xf32>
    %cst_40 = arith.constant 3.200000e+01 : f32
    %74 = vector.broadcast %cst_40 : f32 to vector<16x1xf32>
    %75 = arith.divf %73, %74 : vector<16x1xf32>
    %76 = vector.broadcast %68 : vector<16x1xf32> to vector<16x32xf32>
    %77 = arith.subf %64, %76 : vector<16x32xf32>
    %cst_41 = arith.constant 9.99999974E-6 : f32
    %78 = vector.broadcast %cst_41 : f32 to vector<16x1xf32>
    %79 = arith.addf %75, %78 : vector<16x1xf32>
    %80 = math.rsqrt %79 : vector<16x1xf32>
    %81 = vector.broadcast %80 : vector<16x1xf32> to vector<16x32xf32>
    %82 = arith.mulf %77, %81 : vector<16x32xf32>
    %83 = vector.broadcast %21 : vector<1x32xf32> to vector<16x32xf32>
    %84 = arith.mulf %82, %83 : vector<16x32xf32>
    %85 = vector.broadcast %22 : vector<1x32xf32> to vector<16x32xf32>
    %86 = arith.addf %84, %85 : vector<16x32xf32>
    %c0_42 = arith.constant 0 : index
    %c0_43 = arith.constant 0 : index
    %87 = vector.load %arg10[%c0_42, %c0_43] : memref<16x32xf32, #tpu.memory_space<vmem>>, vector<16x32xf32>
    tpu.vector_store %arg10[%c0_42, %c0_43], %86 {strides = array<i32>} : memref<16x32xf32, #tpu.memory_space<vmem>>, vector<16x32xf32>,
    return
  }
  func.func @transform_0(%arg0: i32) -> (i32, i32) {
    %c0_i32 = arith.constant 0 : i32
    %c0_i32_0 = arith.constant 0 : i32
    return %arg0, %c0_i32 : i32, i32
  }
  func.func @transform_1(%arg0: i32) -> (i32, i32) {
    %c0_i32 = arith.constant 0 : i32
    %c0_i32_0 = arith.constant 0 : i32
    %c0_i32_1 = arith.constant 0 : i32
    return %c0_i32, %c0_i32_0 : i32, i32
  }
  func.func @transform_2(%arg0: i32) -> (i32, i32) {
    %c0_i32 = arith.constant 0 : i32
    %c0_i32_0 = arith.constant 0 : i32
    %c0_i32_1 = arith.constant 0 : i32
    return %c0_i32, %c0_i32_0 : i32, i32
  }
  func.func @transform_3(%arg0: i32) -> (i32, i32) {
    %c0_i32 = arith.constant 0 : i32
    %c0_i32_0 = arith.constant 0 : i32
    %c0_i32_1 = arith.constant 0 : i32
    return %c0_i32, %c0_i32_0 : i32, i32
  }
  func.func @transform_4(%arg0: i32) -> (i32, i32) {
    %c0_i32 = arith.constant 0 : i32
    %c0_i32_0 = arith.constant 0 : i32
    %c0_i32_1 = arith.constant 0 : i32
    return %c0_i32, %c0_i32_0 : i32, i32
  }
  func.func @transform_5(%arg0: i32) -> (i32, i32) {
    %c0_i32 = arith.constant 0 : i32
    %c0_i32_0 = arith.constant 0 : i32
    %c0_i32_1 = arith.constant 0 : i32
    return %c0_i32, %c0_i32_0 : i32, i32
  }
  func.func @transform_6(%arg0: i32) -> (i32, i32) {
    %c0_i32 = arith.constant 0 : i32
    %c0_i32_0 = arith.constant 0 : i32
    %c0_i32_1 = arith.constant 0 : i32
    return %c0_i32, %c0_i32_0 : i32, i32
  }
  func.func @transform_7(%arg0: i32) -> (i32, i32) {
    %c0_i32 = arith.constant 0 : i32
    %c0_i32_0 = arith.constant 0 : i32
    %c0_i32_1 = arith.constant 0 : i32
    return %c0_i32, %c0_i32_0 : i32, i32
  }
  func.func @transform_8(%arg0: i32) -> (i32, i32) {
    %c0_i32 = arith.constant 0 : i32
    %c0_i32_0 = arith.constant 0 : i32
    %c0_i32_1 = arith.constant 0 : i32
    return %c0_i32, %c0_i32_0 : i32, i32
  }
  func.func @transform_9(%arg0: i32) -> (i32, i32) {
    %c0_i32 = arith.constant 0 : i32
    %c0_i32_0 = arith.constant 0 : i32
    return %arg0, %c0_i32 : i32, i32
  }
}

module attributes {stable_mosaic.version = 11 : i64} {
  func.func @_encoder_kernel(%arg0: i32, %arg1: memref<16x32xf32, #tpu.memory_space<vmem>>, %arg2: memref<2x8xf32, #tpu.memory_space<vmem>>, %arg3: memref<32x96xbf16, #tpu.memory_space<vmem>>, %arg4: memref<1x96xf32, #tpu.memory_space<vmem>>, %arg5: memref<32x32xbf16, #tpu.memory_space<vmem>>, %arg6: memref<6x32xf32, #tpu.memory_space<vmem>>, %arg7: memref<32x64xbf16, #tpu.memory_space<vmem>>, %arg8: memref<1x64xf32, #tpu.memory_space<vmem>>, %arg9: memref<64x32xbf16, #tpu.memory_space<vmem>>, %arg10: memref<16x32xf32, #tpu.memory_space<vmem>>, %arg11: memref<16x96xbf16, #tpu.memory_space<vmem>>, %arg12: memref<16x32xbf16, #tpu.memory_space<vmem>>) attributes {dimension_semantics = [#tpu.dimension_semantics<parallel>], iteration_bounds = array<i64: 1>, scalar_prefetch = 0 : i64, scratch_operands = 2 : i64, tpu.core_type = #tpu.core_type<tc>, window_params = [{transform_indices = @transform_0, window_bounds = array<i64: 16, 32>}, {pipeline_mode = #tpu.pipeline_mode<synchronous>, transform_indices = @transform_1, window_bounds = array<i64: 2, 8>}, {pipeline_mode = #tpu.pipeline_mode<synchronous>, transform_indices = @transform_2, window_bounds = array<i64: 32, 96>}, {pipeline_mode = #tpu.pipeline_mode<synchronous>, transform_indices = @transform_3, window_bounds = array<i64: 1, 96>}, {pipeline_mode = #tpu.pipeline_mode<synchronous>, transform_indices = @transform_4, window_bounds = array<i64: 32, 32>}, {pipeline_mode = #tpu.pipeline_mode<synchronous>, transform_indices = @transform_5, window_bounds = array<i64: 6, 32>}, {pipeline_mode = #tpu.pipeline_mode<synchronous>, transform_indices = @transform_6, window_bounds = array<i64: 32, 64>}, {pipeline_mode = #tpu.pipeline_mode<synchronous>, transform_indices = @transform_7, window_bounds = array<i64: 1, 64>}, {pipeline_mode = #tpu.pipeline_mode<synchronous>, transform_indices = @transform_8, window_bounds = array<i64: 64, 32>}, {transform_indices = @transform_9, window_bounds = array<i64: 16, 32>}]} {
    %c0 = arith.constant 0 : index
    %c0_0 = arith.constant 0 : index
    %0 = vector.load %arg1[%c0, %c0_0] : memref<16x32xf32, #tpu.memory_space<vmem>>, vector<16x32xf32>
    %c0_1 = arith.constant 0 : index
    %c0_2 = arith.constant 0 : index
    %1 = vector.load %arg3[%c0_1, %c0_2] : memref<32x96xbf16, #tpu.memory_space<vmem>>, vector<32x96xbf16>
    %2 = arith.truncf %0 : vector<16x32xf32> to vector<16x32xbf16>
    %cst = arith.constant dense<0.000000e+00> : vector<16x96xf32>
    %3 = tpu.matmul %2, %1, %cst {dimension_numbers = #tpu.dot_dimension_numbers<[1], [0], [0], [1], [0, 0, 1, 1], [], []>} : vector<16x32xbf16>, vector<32x96xbf16>, vector<16x96xf32> -> vector<16x96xf32>
    %c0_3 = arith.constant 0 : index
    %c0_4 = arith.constant 0 : index
    %4 = vector.load %arg4[%c0_3, %c0_4] : memref<1x96xf32, #tpu.memory_space<vmem>>, vector<1x96xf32>
    %5 = vector.broadcast %4 : vector<1x96xf32> to vector<16x96xf32>
    %6 = arith.addf %3, %5 : vector<16x96xf32>
    %7 = arith.truncf %6 : vector<16x96xf32> to vector<16x96xbf16>
    %c0_5 = arith.constant 0 : index
    %c0_6 = arith.constant 0 : index
    %8 = vector.load %arg11[%c0_5, %c0_6] : memref<16x96xbf16, #tpu.memory_space<vmem>>, vector<16x96xbf16>
    tpu.vector_store %arg11[%c0_5, %c0_6], %7 {strides = array<i32>} : memref<16x96xbf16, #tpu.memory_space<vmem>>, vector<16x96xbf16>,
    %9 = tpu.iota {dimensions = array<i32: 0>} : vector<8x8xi32>
    %10 = tpu.iota {dimensions = array<i32: 1>} : vector<8x8xi32>
    %11 = arith.cmpi sgt, %10, %9 : vector<8x8xi32>
    %cst_7 = arith.constant -1.000000e+30 : f32
    %cst_8 = arith.constant 0.000000e+00 : f32
    %12 = vector.broadcast %cst_7 : f32 to vector<8x8xf32>
    %13 = vector.broadcast %cst_8 : f32 to vector<8x8xf32>
    %14 = arith.select %11, %12, %13 : vector<8x8xi1>, vector<8x8xf32>
    %c2_i32 = arith.constant 2 : i32
    %15 = arith.muli %arg0, %c2_i32 : i32
    %c0_i32 = arith.constant 0 : i32
    %c2_i32_9 = arith.constant 2 : i32
    %16 = arith.addi %c0_i32, %c2_i32_9 : i32
    %c1_i32 = arith.constant 1 : i32
    scf.for %arg13 = %c0_i32 to %16 step %c1_i32  : i32 {
      %c1_i32_44 = arith.constant 1 : i32
      %88 = arith.muli %arg13, %c1_i32_44 : i32
      %c0_i32_45 = arith.constant 0 : i32
      %89 = arith.addi %c0_i32_45, %88 : i32
      %c8_i32 = arith.constant 8 : i32
      %90 = arith.muli %89, %c8_i32 : i32
      %91 = tpu.assume_multiple %90, 8 : i32
      %92 = arith.addi %15, %89 : i32
      %93 = arith.index_cast %92 : i32 to index
      %c0_46 = arith.constant 0 : index
      %94 = vector.load %arg2[%93, %c0_46] : memref<2x8xf32, #tpu.memory_space<vmem>>, vector<1x8xf32>
      %95 = vector.broadcast %94 : vector<1x8xf32> to vector<8x8xf32>
      %96 = arith.addf %14, %95 : vector<8x8xf32>
      %97 = arith.index_cast %91 : i32 to index
      %c0_47 = arith.constant 0 : index
      %98 = vector.load %arg11[%97, %c0_47] : memref<16x96xbf16, #tpu.memory_space<vmem>>, vector<8x8xbf16>
      %99 = arith.index_cast %91 : i32 to index
      %c32 = arith.constant 32 : index
      %100 = vector.load %arg11[%99, %c32] : memref<16x96xbf16, #tpu.memory_space<vmem>>, vector<8x8xbf16>
      %101 = arith.index_cast %91 : i32 to index
      %c64 = arith.constant 64 : index
      %102 = vector.load %arg11[%101, %c64] : memref<16x96xbf16, #tpu.memory_space<vmem>>, vector<8x8xbf16>
      %cst_48 = arith.constant dense<0.000000e+00> : vector<8x8xf32>
      %103 = tpu.matmul %98, %100, %cst_48 {dimension_numbers = #tpu.dot_dimension_numbers<[1], [1], [0], [0], [0, 0, 1, 0], [], []>} : vector<8x8xbf16>, vector<8x8xbf16>, vector<8x8xf32> -> vector<8x8xf32>
      %104 = arith.addf %103, %96 : vector<8x8xf32>
      %cst_49 = arith.constant dense<0xFF800000> : vector<8xf32>
      %105 = vector.multi_reduction <maximumf>, %104, %cst_49 [1] : vector<8x8xf32> to vector<8xf32>
      %106 = vector.shape_cast %105 : vector<8xf32> to vector<8x1xf32>
      %107 = vector.broadcast %106 : vector<8x1xf32> to vector<8x8xf32>
      %108 = arith.subf %104, %107 : vector<8x8xf32>
      %109 = math.exp %108 : vector<8x8xf32>
      %cst_50 = arith.constant dense<0.000000e+00> : vector<8xf32>
      %110 = vector.multi_reduction <add>, %109, %cst_50 [1] : vector<8x8xf32> to vector<8xf32>
      %111 = vector.shape_cast %110 : vector<8xf32> to vector<8x1xf32>
      %112 = tpu.reciprocal %111 {approx = true} : vector<8x1xf32> -> vector<8x1xf32>
      %113 = vector.broadcast %112 : vector<8x1xf32> to vector<8x8xf32>
      %114 = arith.mulf %109, %113 : vector<8x8xf32>
      %115 = arith.truncf %114 : vector<8x8xf32> to vector<8x8xbf16>
      %cst_51 = arith.constant dense<0.000000e+00> : vector<8x8xf32>
      %116 = tpu.matmul %115, %102, %cst_51 {dimension_numbers = #tpu.dot_dimension_numbers<[1], [0], [0], [1], [0, 0, 1, 1], [], []>} : vector<8x8xbf16>, vector<8x8xbf16>, vector<8x8xf32> -> vector<8x8xf32>
      %117 = arith.index_cast %91 : i32 to index
      %c8 = arith.constant 8 : index
      %118 = vector.load %arg11[%117, %c8] : memref<16x96xbf16, #tpu.memory_space<vmem>>, vector<8x8xbf16>
      %119 = arith.index_cast %91 : i32 to index
      %c40 = arith.constant 40 : index
      %120 = vector.load %arg11[%119, %c40] : memref<16x96xbf16, #tpu.memory_space<vmem>>, vector<8x8xbf16>
      %121 = arith.index_cast %91 : i32 to index
      %c72 = arith.constant 72 : index
      %122 = vector.load %arg11[%121, %c72] : memref<16x96xbf16, #tpu.memory_space<vmem>>, vector<8x8xbf16>
      %cst_52 = arith.constant dense<0.000000e+00> : vector<8x8xf32>
      %123 = tpu.matmul %118, %120, %cst_52 {dimension_numbers = #tpu.dot_dimension_numbers<[1], [1], [0], [0], [0, 0, 1, 0], [], []>} : vector<8x8xbf16>, vector<8x8xbf16>, vector<8x8xf32> -> vector<8x8xf32>
      %124 = arith.addf %123, %96 : vector<8x8xf32>
      %cst_53 = arith.constant dense<0xFF800000> : vector<8xf32>
      %125 = vector.multi_reduction <maximumf>, %124, %cst_53 [1] : vector<8x8xf32> to vector<8xf32>
      %126 = vector.shape_cast %125 : vector<8xf32> to vector<8x1xf32>
      %127 = vector.broadcast %126 : vector<8x1xf32> to vector<8x8xf32>
      %128 = arith.subf %124, %127 : vector<8x8xf32>
      %129 = math.exp %128 : vector<8x8xf32>
      %cst_54 = arith.constant dense<0.000000e+00> : vector<8xf32>
      %130 = vector.multi_reduction <add>, %129, %cst_54 [1] : vector<8x8xf32> to vector<8xf32>
      %131 = vector.shape_cast %130 : vector<8xf32> to vector<8x1xf32>
      %132 = tpu.reciprocal %131 {approx = true} : vector<8x1xf32> -> vector<8x1xf32>
      %133 = vector.broadcast %132 : vector<8x1xf32> to vector<8x8xf32>
      %134 = arith.mulf %129, %133 : vector<8x8xf32>
      %135 = arith.truncf %134 : vector<8x8xf32> to vector<8x8xbf16>
      %cst_55 = arith.constant dense<0.000000e+00> : vector<8x8xf32>
      %136 = tpu.matmul %135, %122, %cst_55 {dimension_numbers = #tpu.dot_dimension_numbers<[1], [0], [0], [1], [0, 0, 1, 1], [], []>} : vector<8x8xbf16>, vector<8x8xbf16>, vector<8x8xf32> -> vector<8x8xf32>
      %137 = arith.index_cast %91 : i32 to index
      %c16 = arith.constant 16 : index
      %138 = vector.load %arg11[%137, %c16] : memref<16x96xbf16, #tpu.memory_space<vmem>>, vector<8x8xbf16>
      %139 = arith.index_cast %91 : i32 to index
      %c48 = arith.constant 48 : index
      %140 = vector.load %arg11[%139, %c48] : memref<16x96xbf16, #tpu.memory_space<vmem>>, vector<8x8xbf16>
      %141 = arith.index_cast %91 : i32 to index
      %c80 = arith.constant 80 : index
      %142 = vector.load %arg11[%141, %c80] : memref<16x96xbf16, #tpu.memory_space<vmem>>, vector<8x8xbf16>
      %cst_56 = arith.constant dense<0.000000e+00> : vector<8x8xf32>
      %143 = tpu.matmul %138, %140, %cst_56 {dimension_numbers = #tpu.dot_dimension_numbers<[1], [1], [0], [0], [0, 0, 1, 0], [], []>} : vector<8x8xbf16>, vector<8x8xbf16>, vector<8x8xf32> -> vector<8x8xf32>
      %144 = arith.addf %143, %96 : vector<8x8xf32>
      %cst_57 = arith.constant dense<0xFF800000> : vector<8xf32>
      %145 = vector.multi_reduction <maximumf>, %144, %cst_57 [1] : vector<8x8xf32> to vector<8xf32>
      %146 = vector.shape_cast %145 : vector<8xf32> to vector<8x1xf32>
      %147 = vector.broadcast %146 : vector<8x1xf32> to vector<8x8xf32>
      %148 = arith.subf %144, %147 : vector<8x8xf32>
      %149 = math.exp %148 : vector<8x8xf32>
      %cst_58 = arith.constant dense<0.000000e+00> : vector<8xf32>
      %150 = vector.multi_reduction <add>, %149, %cst_58 [1] : vector<8x8xf32> to vector<8xf32>
      %151 = vector.shape_cast %150 : vector<8xf32> to vector<8x1xf32>
      %152 = tpu.reciprocal %151 {approx = true} : vector<8x1xf32> -> vector<8x1xf32>
      %153 = vector.broadcast %152 : vector<8x1xf32> to vector<8x8xf32>
      %154 = arith.mulf %149, %153 : vector<8x8xf32>
      %155 = arith.truncf %154 : vector<8x8xf32> to vector<8x8xbf16>
      %cst_59 = arith.constant dense<0.000000e+00> : vector<8x8xf32>
      %156 = tpu.matmul %155, %142, %cst_59 {dimension_numbers = #tpu.dot_dimension_numbers<[1], [0], [0], [1], [0, 0, 1, 1], [], []>} : vector<8x8xbf16>, vector<8x8xbf16>, vector<8x8xf32> -> vector<8x8xf32>
      %157 = arith.index_cast %91 : i32 to index
      %c24 = arith.constant 24 : index
      %158 = vector.load %arg11[%157, %c24] : memref<16x96xbf16, #tpu.memory_space<vmem>>, vector<8x8xbf16>
      %159 = arith.index_cast %91 : i32 to index
      %c56 = arith.constant 56 : index
      %160 = vector.load %arg11[%159, %c56] : memref<16x96xbf16, #tpu.memory_space<vmem>>, vector<8x8xbf16>
      %161 = arith.index_cast %91 : i32 to index
      %c88 = arith.constant 88 : index
      %162 = vector.load %arg11[%161, %c88] : memref<16x96xbf16, #tpu.memory_space<vmem>>, vector<8x8xbf16>
      %cst_60 = arith.constant dense<0.000000e+00> : vector<8x8xf32>
      %163 = tpu.matmul %158, %160, %cst_60 {dimension_numbers = #tpu.dot_dimension_numbers<[1], [1], [0], [0], [0, 0, 1, 0], [], []>} : vector<8x8xbf16>, vector<8x8xbf16>, vector<8x8xf32> -> vector<8x8xf32>
      %164 = arith.addf %163, %96 : vector<8x8xf32>
      %cst_61 = arith.constant dense<0xFF800000> : vector<8xf32>
      %165 = vector.multi_reduction <maximumf>, %164, %cst_61 [1] : vector<8x8xf32> to vector<8xf32>
      %166 = vector.shape_cast %165 : vector<8xf32> to vector<8x1xf32>
      %167 = vector.broadcast %166 : vector<8x1xf32> to vector<8x8xf32>
      %168 = arith.subf %164, %167 : vector<8x8xf32>
      %169 = math.exp %168 : vector<8x8xf32>
      %cst_62 = arith.constant dense<0.000000e+00> : vector<8xf32>
      %170 = vector.multi_reduction <add>, %169, %cst_62 [1] : vector<8x8xf32> to vector<8xf32>
      %171 = vector.shape_cast %170 : vector<8xf32> to vector<8x1xf32>
      %172 = tpu.reciprocal %171 {approx = true} : vector<8x1xf32> -> vector<8x1xf32>
      %173 = vector.broadcast %172 : vector<8x1xf32> to vector<8x8xf32>
      %174 = arith.mulf %169, %173 : vector<8x8xf32>
      %175 = arith.truncf %174 : vector<8x8xf32> to vector<8x8xbf16>
      %cst_63 = arith.constant dense<0.000000e+00> : vector<8x8xf32>
      %176 = tpu.matmul %175, %162, %cst_63 {dimension_numbers = #tpu.dot_dimension_numbers<[1], [0], [0], [1], [0, 0, 1, 1], [], []>} : vector<8x8xbf16>, vector<8x8xbf16>, vector<8x8xf32> -> vector<8x8xf32>
      %177 = tpu.concatenate %116, %136, %156, %176 in 1 : vector<8x8xf32>, vector<8x8xf32>, vector<8x8xf32>, vector<8x8xf32> -> vector<8x32xf32>
      %178 = arith.truncf %177 : vector<8x32xf32> to vector<8x32xbf16>
      %179 = arith.index_cast %91 : i32 to index
      %c0_64 = arith.constant 0 : index
      %180 = vector.load %arg12[%179, %c0_64] : memref<16x32xbf16, #tpu.memory_space<vmem>>, vector<8x32xbf16>
      tpu.vector_store %arg12[%179, %c0_64], %178 {strides = array<i32>} : memref<16x32xbf16, #tpu.memory_space<vmem>>, vector<8x32xbf16>,
    }
    %c2_i32_10 = arith.constant 2 : i32
    %c0_11 = arith.constant 0 : index
    %c0_12 = arith.constant 0 : index
    %17 = vector.load %arg6[%c0_11, %c0_12] : memref<6x32xf32, #tpu.memory_space<vmem>>, vector<1x32xf32>
    %c1 = arith.constant 1 : index
    %c0_13 = arith.constant 0 : index
    %18 = vector.load %arg6[%c1, %c0_13] : memref<6x32xf32, #tpu.memory_space<vmem>>, vector<1x32xf32>
    %c2 = arith.constant 2 : index
    %c0_14 = arith.constant 0 : index
    %19 = vector.load %arg6[%c2, %c0_14] : memref<6x32xf32, #tpu.memory_space<vmem>>, vector<1x32xf32>
    %c3 = arith.constant 3 : index
    %c0_15 = arith.constant 0 : index
    %20 = vector.load %arg6[%c3, %c0_15] : memref<6x32xf32, #tpu.memory_space<vmem>>, vector<1x32xf32>
    %c4 = arith.constant 4 : index
    %c0_16 = arith.constant 0 : index
    %21 = vector.load %arg6[%c4, %c0_16] : memref<6x32xf32, #tpu.memory_space<vmem>>, vector<1x32xf32>
    %c5 = arith.constant 5 : index
    %c0_17 = arith.constant 0 : index
    %22 = vector.load %arg6[%c5, %c0_17] : memref<6x32xf32, #tpu.memory_space<vmem>>, vector<1x32xf32>
    %c0_18 = arith.constant 0 : index
    %c0_19 = arith.constant 0 : index
    %23 = vector.load %arg12[%c0_18, %c0_19] : memref<16x32xbf16, #tpu.memory_space<vmem>>, vector<16x32xbf16>
    %c0_20 = arith.constant 0 : index
    %c0_21 = arith.constant 0 : index
    %24 = vector.load %arg5[%c0_20, %c0_21] : memref<32x32xbf16, #tpu.memory_space<vmem>>, vector<32x32xbf16>
    %cst_22 = arith.constant dense<0.000000e+00> : vector<16x32xf32>
    %25 = tpu.matmul %23, %24, %cst_22 {dimension_numbers = #tpu.dot_dimension_numbers<[1], [0], [0], [1], [0, 0, 1, 1], [], []>} : vector<16x32xbf16>, vector<32x32xbf16>, vector<16x32xf32> -> vector<16x32xf32>
    %26 = vector.broadcast %17 : vector<1x32xf32> to vector<16x32xf32>
    %27 = arith.addf %25, %26 : vector<16x32xf32>
    %28 = arith.addf %0, %27 : vector<16x32xf32>
    %cst_23 = arith.constant dense<0.000000e+00> : vector<16xf32>
    %29 = vector.multi_reduction <add>, %28, %cst_23 [1] : vector<16x32xf32> to vector<16xf32>
    %30 = vector.shape_cast %29 : vector<16xf32> to vector<16x1xf32>
    %cst_24 = arith.constant 3.200000e+01 : f32
    %31 = vector.broadcast %cst_24 : f32 to vector<16x1xf32>
    %32 = arith.divf %30, %31 : vector<16x1xf32>
    %33 = vector.broadcast %32 : vector<16x1xf32> to vector<16x32xf32>
    %34 = arith.subf %28, %33 : vector<16x32xf32>
    %35 = arith.mulf %34, %34 : vector<16x32xf32>
    %cst_25 = arith.constant dense<0.000000e+00> : vector<16xf32>
    %36 = vector.multi_reduction <add>, %35, %cst_25 [1] : vector<16x32xf32> to vector<16xf32>
    %37 = vector.shape_cast %36 : vector<16xf32> to vector<16x1xf32>
    %cst_26 = arith.constant 3.200000e+01 : f32
    %38 = vector.broadcast %cst_26 : f32 to vector<16x1xf32>
    %39 = arith.divf %37, %38 : vector<16x1xf32>
    %40 = vector.broadcast %32 : vector<16x1xf32> to vector<16x32xf32>
    %41 = arith.subf %28, %40 : vector<16x32xf32>
    %cst_27 = arith.constant 9.99999974E-6 : f32
    %42 = vector.broadcast %cst_27 : f32 to vector<16x1xf32>
    %43 = arith.addf %39, %42 : vector<16x1xf32>
    %44 = math.rsqrt %43 : vector<16x1xf32>
    %45 = vector.broadcast %44 : vector<16x1xf32> to vector<16x32xf32>
    %46 = arith.mulf %41, %45 : vector<16x32xf32>
    %47 = vector.broadcast %18 : vector<1x32xf32> to vector<16x32xf32>
    %48 = arith.mulf %46, %47 : vector<16x32xf32>
    %49 = vector.broadcast %19 : vector<1x32xf32> to vector<16x32xf32>
    %50 = arith.addf %48, %49 : vector<16x32xf32>
    %c0_28 = arith.constant 0 : index
    %c0_29 = arith.constant 0 : index
    %51 = vector.load %arg7[%c0_28, %c0_29] : memref<32x64xbf16, #tpu.memory_space<vmem>>, vector<32x64xbf16>
    %52 = arith.truncf %50 : vector<16x32xf32> to vector<16x32xbf16>
    %cst_30 = arith.constant dense<0.000000e+00> : vector<16x64xf32>
    %53 = tpu.matmul %52, %51, %cst_30 {dimension_numbers = #tpu.dot_dimension_numbers<[1], [0], [0], [1], [0, 0, 1, 1], [], []>} : vector<16x32xbf16>, vector<32x64xbf16>, vector<16x64xf32> -> vector<16x64xf32>
    %c0_31 = arith.constant 0 : index
    %c0_32 = arith.constant 0 : index
    %54 = vector.load %arg8[%c0_31, %c0_32] : memref<1x64xf32, #tpu.memory_space<vmem>>, vector<1x64xf32>
    %55 = vector.broadcast %54 : vector<1x64xf32> to vector<16x64xf32>
    %56 = arith.addf %53, %55 : vector<16x64xf32>
    %cst_33 = arith.constant 0.000000e+00 : f32
    %57 = vector.broadcast %cst_33 : f32 to vector<16x64xf32>
    %58 = arith.maximumf %56, %57 : vector<16x64xf32>
    %c0_34 = arith.constant 0 : index
    %c0_35 = arith.constant 0 : index
    %59 = vector.load %arg9[%c0_34, %c0_35] : memref<64x32xbf16, #tpu.memory_space<vmem>>, vector<64x32xbf16>
    %60 = arith.truncf %58 : vector<16x64xf32> to vector<16x64xbf16>
    %cst_36 = arith.constant dense<0.000000e+00> : vector<16x32xf32>
    %61 = tpu.matmul %60, %59, %cst_36 {dimension_numbers = #tpu.dot_dimension_numbers<[1], [0], [0], [1], [0, 0, 1, 1], [], []>} : vector<16x64xbf16>, vector<64x32xbf16>, vector<16x32xf32> -> vector<16x32xf32>
    %62 = vector.broadcast %20 : vector<1x32xf32> to vector<16x32xf32>
    %63 = arith.addf %61, %62 : vector<16x32xf32>
    %64 = arith.addf %50, %63 : vector<16x32xf32>
    %cst_37 = arith.constant dense<0.000000e+00> : vector<16xf32>
    %65 = vector.multi_reduction <add>, %64, %cst_37 [1] : vector<16x32xf32> to vector<16xf32>
    %66 = vector.shape_cast %65 : vector<16xf32> to vector<16x1xf32>
    %cst_38 = arith.constant 3.200000e+01 : f32
    %67 = vector.broadcast %cst_38 : f32 to vector<16x1xf32>
    %68 = arith.divf %66, %67 : vector<16x1xf32>
    %69 = vector.broadcast %68 : vector<16x1xf32> to vector<16x32xf32>
    %70 = arith.subf %64, %69 : vector<16x32xf32>
    %71 = arith.mulf %70, %70 : vector<16x32xf32>
    %cst_39 = arith.constant dense<0.000000e+00> : vector<16xf32>
    %72 = vector.multi_reduction <add>, %71, %cst_39 [1] : vector<16x32xf32> to vector<16xf32>
    %73 = vector.shape_cast %72 : vector<16xf32> to vector<16x1xf32>
    %cst_40 = arith.constant 3.200000e+01 : f32
    %74 = vector.broadcast %cst_40 : f32 to vector<16x1xf32>
    %75 = arith.divf %73, %74 : vector<16x1xf32>
    %76 = vector.broadcast %68 : vector<16x1xf32> to vector<16x32xf32>
    %77 = arith.subf %64, %76 : vector<16x32xf32>
    %cst_41 = arith.constant 9.99999974E-6 : f32
    %78 = vector.broadcast %cst_41 : f32 to vector<16x1xf32>
    %79 = arith.addf %75, %78 : vector<16x1xf32>
    %80 = math.rsqrt %79 : vector<16x1xf32>
    %81 = vector.broadcast %80 : vector<16x1xf32> to vector<16x32xf32>
    %82 = arith.mulf %77, %81 : vector<16x32xf32>
    %83 = vector.broadcast %21 : vector<1x32xf32> to vector<16x32xf32>
    %84 = arith.mulf %82, %83 : vector<16x32xf32>
    %85 = vector.broadcast %22 : vector<1x32xf32> to vector<16x32xf32>
    %86 = arith.addf %84, %85 : vector<16x32xf32>
    %c0_42 = arith.constant 0 : index
    %c0_43 = arith.constant 0 : index
    %87 = vector.load %arg10[%c0_42, %c0_43] : memref<16x32xf32, #tpu.memory_space<vmem>>, vector<16x32xf32>
    tpu.vector_store %arg10[%c0_42, %c0_43], %86 {strides = array<i32>} : memref<16x32xf32, #tpu.memory_space<vmem>>, vector<16x32xf32>,
    return
  }
  func.func @transform_0(%arg0: i32) -> (i32, i32) {
    %c0_i32 = arith.constant 0 : i32
    %c0_i32_0 = arith.constant 0 : i32
    return %arg0, %c0_i32 : i32, i32
  }
  func.func @transform_1(%arg0: i32) -> (i32, i32) {
    %c0_i32 = arith.constant 0 : i32
    %c0_i32_0 = arith.constant 0 : i32
    %c0_i32_1 = arith.constant 0 : i32
    return %c0_i32, %c0_i32_0 : i32, i32
  }
  func.func @transform_2(%arg0: i32) -> (i32, i32) {
    %c0_i32 = arith.constant 0 : i32
    %c0_i32_0 = arith.constant 0 : i32
    %c0_i32_1 = arith.constant 0 : i32
    return %c0_i32, %c0_i32_0 : i32, i32
  }
  func.func @transform_3(%arg0: i32) -> (i32, i32) {
    %c0_i32 = arith.constant 0 : i32
    %c0_i32_0 = arith.constant 0 : i32
    %c0_i32_1 = arith.constant 0 : i32
    return %c0_i32, %c0_i32_0 : i32, i32
  }
  func.func @transform_4(%arg0: i32) -> (i32, i32) {
    %c0_i32 = arith.constant 0 : i32
    %c0_i32_0 = arith.constant 0 : i32
    %c0_i32_1 = arith.constant 0 : i32
    return %c0_i32, %c0_i32_0 : i32, i32
  }
  func.func @transform_5(%arg0: i32) -> (i32, i32) {
    %c0_i32 = arith.constant 0 : i32
    %c0_i32_0 = arith.constant 0 : i32
    %c0_i32_1 = arith.constant 0 : i32
    return %c0_i32, %c0_i32_0 : i32, i32
  }
  func.func @transform_6(%arg0: i32) -> (i32, i32) {
    %c0_i32 = arith.constant 0 : i32
    %c0_i32_0 = arith.constant 0 : i32
    %c0_i32_1 = arith.constant 0 : i32
    return %c0_i32, %c0_i32_0 : i32, i32
  }
  func.func @transform_7(%arg0: i32) -> (i32, i32) {
    %c0_i32 = arith.constant 0 : i32
    %c0_i32_0 = arith.constant 0 : i32
    %c0_i32_1 = arith.constant 0 : i32
    return %c0_i32, %c0_i32_0 : i32, i32
  }
  func.func @transform_8(%arg0: i32) -> (i32, i32) {
    %c0_i32 = arith.constant 0 : i32
    %c0_i32_0 = arith.constant 0 : i32
    %c0_i32_1 = arith.constant 0 : i32
    return %c0_i32, %c0_i32_0 : i32, i32
  }
  func.func @transform_9(%arg0: i32) -> (i32, i32) {
    %c0_i32 = arith.constant 0 : i32
    %c0_i32_0 = arith.constant 0 : i32
    return %arg0, %c0_i32 : i32, i32
  }
}

</mosaic_0001>

<llo_original>
// kernel: tpu_custom_call.1
$region0: #{tpu_custom_call.1}
  #allocation0 [shape = 'u32[]', space=smem, size = 0x4, offset = 0x4, fixed_abs, tag = 'smem constant byte address 0x4 - core index']
  #allocation1 [shape = 'u32[144,128]{1,0:T(1,128)}', space=vmem, size = 0x12000, scoped, tag = 'internal scratch']
  #allocation2 [shape = 'bf16[16,96]{1,0:T(8,128)(2,1)}', space=vmem, size = 0x1000, scoped, tag = 'scratch operand']
  #allocation3 [shape = 'bf16[16,32]{1,0:T(8,128)(2,1)}', space=vmem, size = 0x1000, scoped, tag = 'scratch operand']
  %s0 = inlined_call_operand.vmem [shape: f32[16,32], index: 0, kind: input, shape index: {}]
  %s1 = inlined_call_operand.hbm [shape: f32[2,8], index: 1, kind: input, shape index: {}]
  %s2 = inlined_call_operand.vmem [shape: bf16[32,96], index: 2, kind: input, shape index: {}]
  %s3 = inlined_call_operand.vmem [shape: f32[1,96], index: 3, kind: input, shape index: {}]
  %s4 = inlined_call_operand.vmem [shape: bf16[32,32], index: 4, kind: input, shape index: {}]
  %s5 = inlined_call_operand.vmem [shape: f32[6,32], index: 5, kind: input, shape index: {}]
  %s6 = inlined_call_operand.hbm [shape: bf16[32,64], index: 6, kind: input, shape index: {}]
  %s7 = inlined_call_operand.vmem [shape: f32[1,64], index: 7, kind: input, shape index: {}]
  %s8 = inlined_call_operand.vmem [shape: bf16[64,32], index: 8, kind: input, shape index: {}]
  %s9 = inlined_call_operand.hbm [shape: f32[16,32], index: 9, kind: output, shape index: {}]
  %s10 = sld [smem:[#allocation0]]
  $region61: #{tpu_custom_call.1} parent=0
    _
  %s12 = ssub.s32 1, %s10
  %s13 = scalar_select 0, %s12, %s10
  $region1: #{tpu_custom_call.1} parent=0
    #allocation4 [shape = 'u8[1024]{0}', space=vmem, size = 0x400, scoped, tag = 'input window, operand 1, single buffered']
    #allocation5 [shape = 's32[1]{0}', space=sflag, size = 0x4, scoped, tag = 'scoped memory for tpu_custom_call.1']
    #allocation6 [shape = 's32[1]{0}', space=sflag, size = 0x4, scoped, tag = 'scoped memory for tpu_custom_call.1']
    #allocation7 [shape = 'u8[8192]{0}', space=vmem, size = 0x2000, scoped, tag = 'input window, operand 6, single buffered']
    #allocation8 [shape = 's32[1]{0}', space=sflag, size = 0x4, scoped, tag = 'scoped memory for tpu_custom_call.1']
    #allocation9 [shape = 'u8[8192]{0}', space=vmem, size = 0x2000, scoped, tag = 'output window, operand 0, single buffered']
    %14 = vsyncpa [#allocation5], 0
    %15 = vsyncpa [#allocation8], 0
    %16 = vsyncpa [#allocation6], 0
    // Predicated region
    $region2: #{tpu_custom_call.1} parent=1 // pred_check
      _
    $region3: #{tpu_custom_call.1} parent=1 // pred_check_branch
      %18 = sbr.rel (0) target = $region5
    $region4: #{tpu_custom_call.1} parent=1 // pred_region
      _
    $region5: #{tpu_custom_call.1} parent=1 // pred_fallthru
      _
    // Predicated region
    $region6: #{tpu_custom_call.1} parent=1 // pred_check
      _
    $region7: #{tpu_custom_call.1} parent=1 // pred_check_branch
      %20 = sbr.rel (0) target = $region9
    $region8: #{tpu_custom_call.1} parent=1 // pred_region
      %s22 = ssub.s32 32, 32
      %23 = vsyncadd [#allocation5], %s22
      %s25 = sshll.u32 [#allocation4], 4
      %s26 = int_to_ptr.vmem [resolvable:$true] %s25
      %28 = dma.hbm_to_vmem [thread:$0]  %s1, 32, %s26, [#allocation5]
    $region9: #{tpu_custom_call.1} parent=1 // pred_fallthru
      _
    // Predicated region
    $region10: #{tpu_custom_call.1} parent=1 // pred_check
      _
    $region11: #{tpu_custom_call.1} parent=1 // pred_check_branch
      %30 = sbr.rel (0) target = $region13
    $region12: #{tpu_custom_call.1} parent=1 // pred_region
      _
    $region13: #{tpu_custom_call.1} parent=1 // pred_fallthru
      _
    // Predicated region
    $region14: #{tpu_custom_call.1} parent=1 // pred_check
      _
    $region15: #{tpu_custom_call.1} parent=1 // pred_check_branch
      %32 = sbr.rel (0) target = $region17
    $region16: #{tpu_custom_call.1} parent=1 // pred_region
      _
    $region17: #{tpu_custom_call.1} parent=1 // pred_fallthru
      _
    // Predicated region
    $region18: #{tpu_custom_call.1} parent=1 // pred_check
      _
    $region19: #{tpu_custom_call.1} parent=1 // pred_check_branch
      %34 = sbr.rel (0) target = $region21
    $region20: #{tpu_custom_call.1} parent=1 // pred_region
      _
    $region21: #{tpu_custom_call.1} parent=1 // pred_fallthru
      _
    // Predicated region
    $region22: #{tpu_custom_call.1} parent=1 // pred_check
      _
    $region23: #{tpu_custom_call.1} parent=1 // pred_check_branch
      %36 = sbr.rel (0) target = $region25
    $region24: #{tpu_custom_call.1} parent=1 // pred_region
      _
    $region25: #{tpu_custom_call.1} parent=1 // pred_fallthru
      _
    // Predicated region
    $region26: #{tpu_custom_call.1} parent=1 // pred_check
      _
    $region27: #{tpu_custom_call.1} parent=1 // pred_check_branch
      %38 = sbr.rel (0) target = $region29
    $region28: #{tpu_custom_call.1} parent=1 // pred_region
      %s40 = ssub.s32 256, 256
      %41 = vsyncadd [#allocation8], %s40
      %s42 = sshll.u32 [#allocation7], 4
      %s43 = int_to_ptr.vmem [resolvable:$true] %s42
      %48 = dma.hbm_to_vmem [thread:$0]  %s6, 256, %s43, [#allocation8], 64, 64, 4
    $region29: #{tpu_custom_call.1} parent=1 // pred_fallthru
      _
    // Predicated region
    $region30: #{tpu_custom_call.1} parent=1 // pred_check
      _
    $region31: #{tpu_custom_call.1} parent=1 // pred_check_branch
      %50 = sbr.rel (0) target = $region33
    $region32: #{tpu_custom_call.1} parent=1 // pred_region
      _
    $region33: #{tpu_custom_call.1} parent=1 // pred_fallthru
      _
    // Predicated region
    $region34: #{tpu_custom_call.1} parent=1 // pred_check
      _
    $region35: #{tpu_custom_call.1} parent=1 // pred_check_branch
      %52 = sbr.rel (0) target = $region37
    $region36: #{tpu_custom_call.1} parent=1 // pred_region
      _
    $region37: #{tpu_custom_call.1} parent=1 // pred_fallthru
      _
    // Predicated region
    $region38: #{tpu_custom_call.1} parent=1 // pred_check
      _
    $region39: #{tpu_custom_call.1} parent=1 // pred_check_branch
      %54 = sbr.rel (0) target = $region41
    $region40: #{tpu_custom_call.1} parent=1 // pred_region
      %55 = dma.done [#allocation5], 32
    $region41: #{tpu_custom_call.1} parent=1 // pred_fallthru
      _
    // Predicated region
    $region42: #{tpu_custom_call.1} parent=1 // pred_check
      _
    $region43: #{tpu_custom_call.1} parent=1 // pred_check_branch
      %57 = sbr.rel (0) target = $region45
    $region44: #{tpu_custom_call.1} parent=1 // pred_region
      %58 = dma.done [#allocation8], 256
    $region45: #{tpu_custom_call.1} parent=1 // pred_fallthru
      _
    %v60 = vld [vmem:[%s0] sm:$0xff]
    %v61 = vld [vmem:[%s0 + $0x8] sm:$0xff]
    %v62 = vld [vmem:[%s2] sm:$0xf]
    %v63 = vld [vmem:[%s2 + $0x4] sm:$0xf]
    %v64 = vld [vmem:[%s2 + $0x8] sm:$0xf]
    %v65 = vld [vmem:[%s2 + $0xc] sm:$0xf]
    %v66 = vpack.c.bf16 %v61, %v60
    %v67 = vld [vmem:[%s3] sm:$0x1]
    %v69 = vlaneseq
    %v70 = vshrl.u32 %v69, 7
    %v71 = vsub.s32 0, %v70
    %v72 = vrot.slane %v67, %v71
    %v78 = vunpack.c.l.b16 %v62
    %v79 = vunpack.c.l.b16 %v63
    %v80 = vunpack.c.l.b16 %v64
    %v81 = vunpack.c.l.b16 %v65
    %v82 = vpack.c.b16 %v79, %v78
    %v83 = vpack.c.b16 %v81, %v80
    %vm86 = vcmask 261120
    %v88 = vsel %vm86, %v66, 0
    %90 = vmatprep.subr.bf16.mxu0 0
    %91 = vmatpush1.bf16.msra.mxu0 0
    %92 = vmatprep.subr.bf16.mxu0 0
    %93 = vmatpush1.bf16.msra.mxu0 0
    %94 = vmatprep.subr.bf16.mxu0 0
    %95 = vmatpush1.bf16.msra.mxu0 0
    %96 = vmatprep.subr.bf16.mxu0 0
    %97 = vmatpush1.bf16.msra.mxu0 0
    %98 = vmatprep.subr.bf16.mxu0 0
    %99 = vmatpush1.bf16.msra.mxu0 0
    %100 = vmatprep.subr.bf16.mxu0 0
    %101 = vmatpush1.bf16.msra.mxu0 0
    %102 = vmatprep.subr.bf16.mxu0 0
    %103 = vmatpush1.bf16.msra.mxu0 %v83
    %104 = vmatprep.subr.bf16.mxu0 0
    %105 = vmatpush1.bf16.msra.mxu0 %v82
    %106 = vmatprep.subr.bf16.mxu0 0
    %107 = vmatpush2.bf16.msra.mxu0 0
    %108 = vmatprep.subr.bf16.mxu0 0
    %109 = vmatpush2.bf16.msra.mxu0 0
    %110 = vmatprep.subr.bf16.mxu0 0
    %111 = vmatpush2.bf16.msra.mxu0 0
    %112 = vmatprep.subr.bf16.mxu0 0
    %113 = vmatpush2.bf16.msra.mxu0 0
    %114 = vmatprep.subr.bf16.mxu0 0
    %115 = vmatpush2.bf16.msra.mxu0 0
    %116 = vmatprep.subr.bf16.mxu0 0
    %117 = vmatpush2.bf16.msra.mxu0 0
    %118 = vmatprep.subr.bf16.mxu0 0
    %119 = vmatpush2.bf16.msra.mxu0 0
    %120 = vmatprep.subr.bf16.mxu0 0
    %121 = vmatpush2.bf16.msra.mxu0 0
    %122 = vmatprep.mubr.bf16.mxu0 0
    %123 = vmatmul.mubr.bf16.gmra.mxu0 %v88
    %v124 = vpop.f32.mrf.mxu0
    %v125 = vadd.f32 %v72, %v124
    %v126 = vpop.f32.mrf.mxu0
    %v127 = vpop.f32.mrf.mxu0
    %v128 = vadd.f32 %v72, %v127
    %v129 = vpop.f32.mrf.mxu0
    %130 = vdwg.mxu0
    %v131 = vpack.c.bf16 %v128, %v125
    %v133 = vunpack.c.l.b16 %v131
    %v134 = vunpack.c.h.b16 %v131
    %v135 = vpack.c.b16 %v133, %v133
    %v136 = vpack.c.b16 %v134, %v134
    %vm139 = vcmask 781312
    %140 = vst.msk [vmem:[#allocation2] sm:$0xf] %vm139, %v135
    %141 = vst.msk [vmem:[#allocation2 + $0x4] sm:$0xf] %vm139, %v136
    %v142 = vlaneseq
    %v143 = vshrl.u32 %v142, 7
    %v144 = vlaneseq
    %v145 = vand.u32 %v144, 127
    %vm146 = vcmp.gt.s32.totalorder %v145, %v143
    %v147 = vsel %vm146, -1e+30, 0.0
    %s148 = smul.u32 0, 2
    loop: start=0, step=1, limit=2
    $region46: #{tpu_custom_call.1} parent=1 // loop_pre_header
      _
    $region47: #{tpu_custom_call.1} parent=1 // loop_header
      %s150 = sphi 0, %s154
      %p151 = scmp.ge.s32.totalorder %s150, 2
    $region48: #{tpu_custom_call.1} parent=1 // loop_header_branch
      %153 = sbr.rel (%p151) target = $region52
    $region49: #{tpu_custom_call.1} parent=1 // loop_body
      %s155 = smul.u32 %s150, 8
      %s156 = sadd.s32 %s148, %s150
      %s157 = scalar_lea.vmem [#allocation4], %s156
      %v158 = vld [vmem:[%s157] sm:$0x1]
      %v159 = vlaneseq
      %v160 = vshrl.u32 %v159, 7
      %v161 = vsub.s32 0, %v160
      %v162 = vrot.slane %v158, %v161
      %v163 = vadd.f32 %v147, %v162
      %s164 = sshra.s32 %s155, 3
      %s165 = sand.u32 %s155, 7
      %s166 = smul.addr %s164, 4
      %s167 = scalar_lea.vmem [#allocation2], %s166
      %v168 = vld [vmem:[%s167] sm:$0xf]
      %v170 = vunpack.c.l.b16 %v168
      %v171 = vpack.c.b16 %v170, %v170
      %172 = vrot.lane.b32.xlu0 %v171, 96
      %v173 = vpop.permute.xlu0 %172
      %vm174 = vcmask 64512
      %v176 = vsel %vm174, %v168, 0
      %v179 = vsel %vm174, %v173, 0
      %181 = vmatprep.subr.bf16.mxu0 0
      %182 = vmatpush1.bf16.xpose.msra.mxu0 0
      %183 = vmatprep.subr.bf16.mxu0 0
      %184 = vmatpush1.bf16.xpose.msra.mxu0 0
      %185 = vmatprep.subr.bf16.mxu0 0
      %186 = vmatpush1.bf16.xpose.msra.mxu0 0
      %187 = vmatprep.subr.bf16.mxu0 0
      %188 = vmatpush1.bf16.xpose.msra.mxu0 0
      %189 = vmatprep.subr.bf16.mxu0 0
      %190 = vmatpush1.bf16.xpose.msra.mxu0 0
      %191 = vmatprep.subr.bf16.mxu0 0
      %192 = vmatpush1.bf16.xpose.msra.mxu0 0
      %193 = vmatprep.subr.bf16.mxu0 0
      %194 = vmatpush1.bf16.xpose.msra.mxu0 0
      %195 = vmatprep.subr.bf16.mxu0 0
      %196 = vmatpush1.bf16.xpose.msra.mxu0 %v179
      %197 = vmatprep.subr.bf16.mxu0 0
      %198 = vmatpush2.bf16.xpose.msra.mxu0 0
      %199 = vmatprep.subr.bf16.mxu0 0
      %200 = vmatpush2.bf16.xpose.msra.mxu0 0
      %201 = vmatprep.subr.bf16.mxu0 0
      %202 = vmatpush2.bf16.xpose.msra.mxu0 0
      %203 = vmatprep.subr.bf16.mxu0 0
      %204 = vmatpush2.bf16.xpose.msra.mxu0 0
      %205 = vmatprep.subr.bf16.mxu0 0
      %206 = vmatpush2.bf16.xpose.msra.mxu0 0
      %207 = vmatprep.subr.bf16.mxu0 0
      %208 = vmatpush2.bf16.xpose.msra.mxu0 0
      %209 = vmatprep.subr.bf16.mxu0 0
      %210 = vmatpush2.bf16.xpose.msra.mxu0 0
      %211 = vmatprep.subr.bf16.mxu0 0
      %212 = vmatpush2.bf16.xpose.msra.mxu0 0
      %213 = vmatprep.mubr.bf16.mxu0 0
      %214 = vmatmul.mubr.bf16.gmra.mxu0 %v176
      %v215 = vpop.f32.mrf.mxu0
      %v216 = vadd.f32 %v163, %v215
      %v217 = vpop.f32.mrf.mxu0
      %v218 = vpop.f32.mrf.mxu0
      %v219 = vpop.f32.mrf.mxu0
      %220 = vdwg.mxu0
      %v221 = vsel %vm174, %v216, -inf
      %222 = vmax.xlane.f32.xlu0 %v221
      %v223 = vpop.xlane.xlu0 %222
      %v224 = vsub.f32 %v216, %v223
      %v225 = vmul.f32 %v224, 1.442695
      %v226 = vpow.pop %v225
      %v227 = vsel %vm174, %v226, 0.0
      %228 = vadd.xlane.f32.xlu0 %v227
      %v229 = vpop.xlane.xlu0 %228
      %v230 = vrcp.pop %v229
      %v231 = vmul.f32 %v226, %v230
      %v232 = vpack.c.bf16 %v231, %v231
      %233 = vrot.lane.b32.xlu0 %v171, 64
      %v234 = vpop.permute.xlu0 %233
      %v236 = vsel %vm174, %v232, 0
      %vm238 = vcmask 1043456
      %v240 = vsel %vm238, %v234, 0
      %242 = vmatprep.subr.bf16.mxu0 0
      %243 = vmatpush1.bf16.msra.mxu0 0
      %244 = vmatprep.subr.bf16.mxu0 0
      %245 = vmatpush1.bf16.msra.mxu0 0
      %246 = vmatprep.subr.bf16.mxu0 0
      %247 = vmatpush1.bf16.msra.mxu0 0
      %248 = vmatprep.subr.bf16.mxu0 0
      %249 = vmatpush1.bf16.msra.mxu0 0
      %250 = vmatprep.subr.bf16.mxu0 0
      %251 = vmatpush1.bf16.msra.mxu0 0
      %252 = vmatprep.subr.bf16.mxu0 0
      %253 = vmatpush1.bf16.msra.mxu0 0
      %254 = vmatprep.subr.bf16.mxu0 0
      %255 = vmatpush1.bf16.msra.mxu0 0
      %256 = vmatprep.subr.bf16.mxu0 0
      %257 = vmatpush1.bf16.msra.mxu0 %v240
      %258 = vmatprep.subr.bf16.mxu0 0
      %259 = vmatpush2.bf16.msra.mxu0 0
      %260 = vmatprep.subr.bf16.mxu0 0
      %261 = vmatpush2.bf16.msra.mxu0 0
      %262 = vmatprep.subr.bf16.mxu0 0
      %263 = vmatpush2.bf16.msra.mxu0 0
      %264 = vmatprep.subr.bf16.mxu0 0
      %265 = vmatpush2.bf16.msra.mxu0 0
      %266 = vmatprep.subr.bf16.mxu0 0
      %267 = vmatpush2.bf16.msra.mxu0 0
      %268 = vmatprep.subr.bf16.mxu0 0
      %269 = vmatpush2.bf16.msra.mxu0 0
      %270 = vmatprep.subr.bf16.mxu0 0
      %271 = vmatpush2.bf16.msra.mxu0 0
      %272 = vmatprep.subr.bf16.mxu0 0
      %273 = vmatpush2.bf16.msra.mxu0 0
      %274 = vmatprep.mubr.bf16.mxu0 0
      %275 = vmatmul.mubr.bf16.gmra.mxu0 %v236
      %v276 = vpop.f32.mrf.mxu0
      %v277 = vadd.f32 0.0, %v276
      %v278 = vpop.f32.mrf.mxu0
      %v279 = vpop.f32.mrf.mxu0
      %v280 = vpop.f32.mrf.mxu0
      %281 = vdwg.mxu0
      %282 = vrot.lane.b32.xlu0 %v171, 120
      %v283 = vpop.permute.xlu0 %282
      %284 = vrot.lane.b32.xlu0 %v171, 88
      %v285 = vpop.permute.xlu0 %284
      %v287 = vsel %vm174, %v283, 0
      %v290 = vsel %vm174, %v285, 0
      %292 = vmatprep.subr.bf16.mxu0 0
      %293 = vmatpush1.bf16.xpose.msra.mxu0 0
      %294 = vmatprep.subr.bf16.mxu0 0
      %295 = vmatpush1.bf16.xpose.msra.mxu0 0
      %296 = vmatprep.subr.bf16.mxu0 0
      %297 = vmatpush1.bf16.xpose.msra.mxu0 0
      %298 = vmatprep.subr.bf16.mxu0 0
      %299 = vmatpush1.bf16.xpose.msra.mxu0 0
      %300 = vmatprep.subr.bf16.mxu0 0
      %301 = vmatpush1.bf16.xpose.msra.mxu0 0
      %302 = vmatprep.subr.bf16.mxu0 0
      %303 = vmatpush1.bf16.xpose.msra.mxu0 0
      %304 = vmatprep.subr.bf16.mxu0 0
      %305 = vmatpush1.bf16.xpose.msra.mxu0 0
      %306 = vmatprep.subr.bf16.mxu0 0
      %307 = vmatpush1.bf16.xpose.msra.mxu0 %v290
      %308 = vmatprep.subr.bf16.mxu0 0
      %309 = vmatpush2.bf16.xpose.msra.mxu0 0
      %310 = vmatprep.subr.bf16.mxu0 0
      %311 = vmatpush2.bf16.xpose.msra.mxu0 0
      %312 = vmatprep.subr.bf16.mxu0 0
      %313 = vmatpush2.bf16.xpose.msra.mxu0 0
      %314 = vmatprep.subr.bf16.mxu0 0
      %315 = vmatpush2.bf16.xpose.msra.mxu0 0
      %316 = vmatprep.subr.bf16.mxu0 0
      %317 = vmatpush2.bf16.xpose.msra.mxu0 0
      %318 = vmatprep.subr.bf16.mxu0 0
      %319 = vmatpush2.bf16.xpose.msra.mxu0 0
      %320 = vmatprep.subr.bf16.mxu0 0
      %321 = vmatpush2.bf16.xpose.msra.mxu0 0
      %322 = vmatprep.subr.bf16.mxu0 0
      %323 = vmatpush2.bf16.xpose.msra.mxu0 0
      %324 = vmatprep.mubr.bf16.mxu0 0
      %325 = vmatmul.mubr.bf16.gmra.mxu0 %v287
      %v326 = vpop.f32.mrf.mxu0
      %v327 = vadd.f32 %v163, %v326
      %v328 = vpop.f32.mrf.mxu0
      %v329 = vpop.f32.mrf.mxu0
      %v330 = vpop.f32.mrf.mxu0
      %331 = vdwg.mxu0
      %v332 = vsel %vm174, %v327, -inf
      %333 = vmax.xlane.f32.xlu0 %v332
      %v334 = vpop.xlane.xlu0 %333
      %v335 = vsub.f32 %v327, %v334
      %v336 = vmul.f32 %v335, 1.442695
      %v337 = vpow.pop %v336
      %v338 = vsel %vm174, %v337, 0.0
      %339 = vadd.xlane.f32.xlu0 %v338
      %v340 = vpop.xlane.xlu0 %339
      %v341 = vrcp.pop %v340
      %v342 = vmul.f32 %v337, %v341
      %v343 = vpack.c.bf16 %v342, %v342
      %344 = vrot.lane.b32.xlu0 %v171, 56
      %v345 = vpop.permute.xlu0 %344
      %v347 = vsel %vm174, %v343, 0
      %v350 = vsel %vm238, %v345, 0
      %352 = vmatprep.subr.bf16.mxu0 0
      %353 = vmatpush1.bf16.msra.mxu0 0
      %354 = vmatprep.subr.bf16.mxu0 0
      %355 = vmatpush1.bf16.msra.mxu0 0
      %356 = vmatprep.subr.bf16.mxu0 0
      %357 = vmatpush1.bf16.msra.mxu0 0
      %358 = vmatprep.subr.bf16.mxu0 0
      %359 = vmatpush1.bf16.msra.mxu0 0
      %360 = vmatprep.subr.bf16.mxu0 0
      %361 = vmatpush1.bf16.msra.mxu0 0
      %362 = vmatprep.subr.bf16.mxu0 0
      %363 = vmatpush1.bf16.msra.mxu0 0
      %364 = vmatprep.subr.bf16.mxu0 0
      %365 = vmatpush1.bf16.msra.mxu0 0
      %366 = vmatprep.subr.bf16.mxu0 0
      %367 = vmatpush1.bf16.msra.mxu0 %v350
      %368 = vmatprep.subr.bf16.mxu0 0
      %369 = vmatpush2.bf16.msra.mxu0 0
      %370 = vmatprep.subr.bf16.mxu0 0
      %371 = vmatpush2.bf16.msra.mxu0 0
      %372 = vmatprep.subr.bf16.mxu0 0
      %373 = vmatpush2.bf16.msra.mxu0 0
      %374 = vmatprep.subr.bf16.mxu0 0
      %375 = vmatpush2.bf16.msra.mxu0 0
      %376 = vmatprep.subr.bf16.mxu0 0
      %377 = vmatpush2.bf16.msra.mxu0 0
      %378 = vmatprep.subr.bf16.mxu0 0
      %379 = vmatpush2.bf16.msra.mxu0 0
      %380 = vmatprep.subr.bf16.mxu0 0
      %381 = vmatpush2.bf16.msra.mxu0 0
      %382 = vmatprep.subr.bf16.mxu0 0
      %383 = vmatpush2.bf16.msra.mxu0 0
      %384 = vmatprep.mubr.bf16.mxu0 0
      %385 = vmatmul.mubr.bf16.gmra.mxu0 %v347
      %v386 = vpop.f32.mrf.mxu0
      %v387 = vadd.f32 0.0, %v386
      %v388 = vpop.f32.mrf.mxu0
      %v389 = vpop.f32.mrf.mxu0
      %v390 = vpop.f32.mrf.mxu0
      %391 = vdwg.mxu0
      %392 = vrot.lane.b32.xlu0 %v171, 112
      %v393 = vpop.permute.xlu0 %392
      %394 = vrot.lane.b32.xlu0 %v171, 80
      %v395 = vpop.permute.xlu0 %394
      %v397 = vsel %vm174, %v393, 0
      %v400 = vsel %vm174, %v395, 0
      %402 = vmatprep.subr.bf16.mxu0 0
      %403 = vmatpush1.bf16.xpose.msra.mxu0 0
      %404 = vmatprep.subr.bf16.mxu0 0
      %405 = vmatpush1.bf16.xpose.msra.mxu0 0
      %406 = vmatprep.subr.bf16.mxu0 0
      %407 = vmatpush1.bf16.xpose.msra.mxu0 0
      %408 = vmatprep.subr.bf16.mxu0 0
      %409 = vmatpush1.bf16.xpose.msra.mxu0 0
      %410 = vmatprep.subr.bf16.mxu0 0
      %411 = vmatpush1.bf16.xpose.msra.mxu0 0
      %412 = vmatprep.subr.bf16.mxu0 0
      %413 = vmatpush1.bf16.xpose.msra.mxu0 0
      %414 = vmatprep.subr.bf16.mxu0 0
      %415 = vmatpush1.bf16.xpose.msra.mxu0 0
      %416 = vmatprep.subr.bf16.mxu0 0
      %417 = vmatpush1.bf16.xpose.msra.mxu0 %v400
      %418 = vmatprep.subr.bf16.mxu0 0
      %419 = vmatpush2.bf16.xpose.msra.mxu0 0
      %420 = vmatprep.subr.bf16.mxu0 0
      %421 = vmatpush2.bf16.xpose.msra.mxu0 0
      %422 = vmatprep.subr.bf16.mxu0 0
      %423 = vmatpush2.bf16.xpose.msra.mxu0 0
      %424 = vmatprep.subr.bf16.mxu0 0
      %425 = vmatpush2.bf16.xpose.msra.mxu0 0
      %426 = vmatprep.subr.bf16.mxu0 0
      %427 = vmatpush2.bf16.xpose.msra.mxu0 0
      %428 = vmatprep.subr.bf16.mxu0 0
      %429 = vmatpush2.bf16.xpose.msra.mxu0 0
      %430 = vmatprep.subr.bf16.mxu0 0
      %431 = vmatpush2.bf16.xpose.msra.mxu0 0
      %432 = vmatprep.subr.bf16.mxu0 0
      %433 = vmatpush2.bf16.xpose.msra.mxu0 0
      %434 = vmatprep.mubr.bf16.mxu0 0
      %435 = vmatmul.mubr.bf16.gmra.mxu0 %v397
      %v436 = vpop.f32.mrf.mxu0
      %v437 = vadd.f32 %v163, %v436
      %v438 = vpop.f32.mrf.mxu0
      %v439 = vpop.f32.mrf.mxu0
      %v440 = vpop.f32.mrf.mxu0
      %441 = vdwg.mxu0
      %v442 = vsel %vm174, %v437, -inf
      %443 = vmax.xlane.f32.xlu0 %v442
      %v444 = vpop.xlane.xlu0 %443
      %v445 = vsub.f32 %v437, %v444
      %v446 = vmul.f32 %v445, 1.442695
      %v447 = vpow.pop %v446
      %v448 = vsel %vm174, %v447, 0.0
      %449 = vadd.xlane.f32.xlu0 %v448
      %v450 = vpop.xlane.xlu0 %449
      %v451 = vrcp.pop %v450
      %v452 = vmul.f32 %v447, %v451
      %v453 = vpack.c.bf16 %v452, %v452
      %454 = vrot.lane.b32.xlu0 %v171, 48
      %v455 = vpop.permute.xlu0 %454
      %v457 = vsel %vm174, %v453, 0
      %v460 = vsel %vm238, %v455, 0
      %462 = vmatprep.subr.bf16.mxu0 0
      %463 = vmatpush1.bf16.msra.mxu0 0
      %464 = vmatprep.subr.bf16.mxu0 0
      %465 = vmatpush1.bf16.msra.mxu0 0
      %466 = vmatprep.subr.bf16.mxu0 0
      %467 = vmatpush1.bf16.msra.mxu0 0
      %468 = vmatprep.subr.bf16.mxu0 0
      %469 = vmatpush1.bf16.msra.mxu0 0
      %470 = vmatprep.subr.bf16.mxu0 0
      %471 = vmatpush1.bf16.msra.mxu0 0
      %472 = vmatprep.subr.bf16.mxu0 0
      %473 = vmatpush1.bf16.msra.mxu0 0
      %474 = vmatprep.subr.bf16.mxu0 0
      %475 = vmatpush1.bf16.msra.mxu0 0
      %476 = vmatprep.subr.bf16.mxu0 0
      %477 = vmatpush1.bf16.msra.mxu0 %v460
      %478 = vmatprep.subr.bf16.mxu0 0
      %479 = vmatpush2.bf16.msra.mxu0 0
      %480 = vmatprep.subr.bf16.mxu0 0
      %481 = vmatpush2.bf16.msra.mxu0 0
      %482 = vmatprep.subr.bf16.mxu0 0
      %483 = vmatpush2.bf16.msra.mxu0 0
      %484 = vmatprep.subr.bf16.mxu0 0
      %485 = vmatpush2.bf16.msra.mxu0 0
      %486 = vmatprep.subr.bf16.mxu0 0
      %487 = vmatpush2.bf16.msra.mxu0 0
      %488 = vmatprep.subr.bf16.mxu0 0
      %489 = vmatpush2.bf16.msra.mxu0 0
      %490 = vmatprep.subr.bf16.mxu0 0
      %491 = vmatpush2.bf16.msra.mxu0 0
      %492 = vmatprep.subr.bf16.mxu0 0
      %493 = vmatpush2.bf16.msra.mxu0 0
      %494 = vmatprep.mubr.bf16.mxu0 0
      %495 = vmatmul.mubr.bf16.gmra.mxu0 %v457
      %v496 = vpop.f32.mrf.mxu0
      %v497 = vadd.f32 0.0, %v496
      %v498 = vpop.f32.mrf.mxu0
      %v499 = vpop.f32.mrf.mxu0
      %v500 = vpop.f32.mrf.mxu0
      %501 = vdwg.mxu0
      %502 = vrot.lane.b32.xlu0 %v171, 104
      %v503 = vpop.permute.xlu0 %502
      %504 = vrot.lane.b32.xlu0 %v171, 72
      %v505 = vpop.permute.xlu0 %504
      %v507 = vsel %vm174, %v503, 0
      %v510 = vsel %vm174, %v505, 0
      %512 = vmatprep.subr.bf16.mxu0 0
      %513 = vmatpush1.bf16.xpose.msra.mxu0 0
      %514 = vmatprep.subr.bf16.mxu0 0
      %515 = vmatpush1.bf16.xpose.msra.mxu0 0
      %516 = vmatprep.subr.bf16.mxu0 0
      %517 = vmatpush1.bf16.xpose.msra.mxu0 0
      %518 = vmatprep.subr.bf16.mxu0 0
      %519 = vmatpush1.bf16.xpose.msra.mxu0 0
      %520 = vmatprep.subr.bf16.mxu0 0
      %521 = vmatpush1.bf16.xpose.msra.mxu0 0
      %522 = vmatprep.subr.bf16.mxu0 0
      %523 = vmatpush1.bf16.xpose.msra.mxu0 0
      %524 = vmatprep.subr.bf16.mxu0 0
      %525 = vmatpush1.bf16.xpose.msra.mxu0 0
      %526 = vmatprep.subr.bf16.mxu0 0
      %527 = vmatpush1.bf16.xpose.msra.mxu0 %v510
      %528 = vmatprep.subr.bf16.mxu0 0
      %529 = vmatpush2.bf16.xpose.msra.mxu0 0
      %530 = vmatprep.subr.bf16.mxu0 0
      %531 = vmatpush2.bf16.xpose.msra.mxu0 0
      %532 = vmatprep.subr.bf16.mxu0 0
      %533 = vmatpush2.bf16.xpose.msra.mxu0 0
      %534 = vmatprep.subr.bf16.mxu0 0
      %535 = vmatpush2.bf16.xpose.msra.mxu0 0
      %536 = vmatprep.subr.bf16.mxu0 0
      %537 = vmatpush2.bf16.xpose.msra.mxu0 0
      %538 = vmatprep.subr.bf16.mxu0 0
      %539 = vmatpush2.bf16.xpose.msra.mxu0 0
      %540 = vmatprep.subr.bf16.mxu0 0
      %541 = vmatpush2.bf16.xpose.msra.mxu0 0
      %542 = vmatprep.subr.bf16.mxu0 0
      %543 = vmatpush2.bf16.xpose.msra.mxu0 0
      %544 = vmatprep.mubr.bf16.mxu0 0
      %545 = vmatmul.mubr.bf16.gmra.mxu0 %v507
      %v546 = vpop.f32.mrf.mxu0
      %v547 = vadd.f32 %v163, %v546
      %v548 = vpop.f32.mrf.mxu0
      %v549 = vpop.f32.mrf.mxu0
      %v550 = vpop.f32.mrf.mxu0
      %551 = vdwg.mxu0
      %v552 = vsel %vm174, %v547, -inf
      %553 = vmax.xlane.f32.xlu0 %v552
      %v554 = vpop.xlane.xlu0 %553
      %v555 = vsub.f32 %v547, %v554
      %v556 = vmul.f32 %v555, 1.442695
      %v557 = vpow.pop %v556
      %v558 = vsel %vm174, %v557, 0.0
      %559 = vadd.xlane.f32.xlu0 %v558
      %v560 = vpop.xlane.xlu0 %559
      %v561 = vrcp.pop %v560
      %v562 = vmul.f32 %v557, %v561
      %v563 = vpack.c.bf16 %v562, %v562
      %564 = vrot.lane.b32.xlu0 %v171, 40
      %v565 = vpop.permute.xlu0 %564
      %v567 = vsel %vm174, %v563, 0
      %v570 = vsel %vm238, %v565, 0
      %572 = vmatprep.subr.bf16.mxu0 0
      %573 = vmatpush1.bf16.msra.mxu0 0
      %574 = vmatprep.subr.bf16.mxu0 0
      %575 = vmatpush1.bf16.msra.mxu0 0
      %576 = vmatprep.subr.bf16.mxu0 0
      %577 = vmatpush1.bf16.msra.mxu0 0
      %578 = vmatprep.subr.bf16.mxu0 0
      %579 = vmatpush1.bf16.msra.mxu0 0
      %580 = vmatprep.subr.bf16.mxu0 0
      %581 = vmatpush1.bf16.msra.mxu0 0
      %582 = vmatprep.subr.bf16.mxu0 0
      %583 = vmatpush1.bf16.msra.mxu0 0
      %584 = vmatprep.subr.bf16.mxu0 0
      %585 = vmatpush1.bf16.msra.mxu0 0
      %586 = vmatprep.subr.bf16.mxu0 0
      %587 = vmatpush1.bf16.msra.mxu0 %v570
      %588 = vmatprep.subr.bf16.mxu0 0
      %589 = vmatpush2.bf16.msra.mxu0 0
      %590 = vmatprep.subr.bf16.mxu0 0
      %591 = vmatpush2.bf16.msra.mxu0 0
      %592 = vmatprep.subr.bf16.mxu0 0
      %593 = vmatpush2.bf16.msra.mxu0 0
      %594 = vmatprep.subr.bf16.mxu0 0
      %595 = vmatpush2.bf16.msra.mxu0 0
      %596 = vmatprep.subr.bf16.mxu0 0
      %597 = vmatpush2.bf16.msra.mxu0 0
      %598 = vmatprep.subr.bf16.mxu0 0
      %599 = vmatpush2.bf16.msra.mxu0 0
      %600 = vmatprep.subr.bf16.mxu0 0
      %601 = vmatpush2.bf16.msra.mxu0 0
      %602 = vmatprep.subr.bf16.mxu0 0
      %603 = vmatpush2.bf16.msra.mxu0 0
      %604 = vmatprep.mubr.bf16.mxu0 0
      %605 = vmatmul.mubr.bf16.gmra.mxu0 %v567
      %v606 = vpop.f32.mrf.mxu0
      %v607 = vadd.f32 0.0, %v606
      %v608 = vpop.f32.mrf.mxu0
      %v609 = vpop.f32.mrf.mxu0
      %v610 = vpop.f32.mrf.mxu0
      %611 = vdwg.mxu0
      %613 = vrot.lane.b32.xlu0 %v387, 8
      %v614 = vpop.permute.xlu0 %613
      %617 = vrot.lane.b32.xlu0 %v497, 16
      %v618 = vpop.permute.xlu0 %617
      %621 = vrot.lane.b32.xlu0 %v607, 24
      %v622 = vpop.permute.xlu0 %621
      %v624 = vsel %vm174, %v277, %v614
      %vm625 = vcmask 130048
      %v626 = vsel %vm625, %v624, %v618
      %vm627 = vcmask 195584
      %v628 = vsel %vm627, %v626, %v622
      %v629 = vpack.c.bf16 %v628, %v628
      %s630 = smul.addr %s164, 4
      %s631 = scalar_lea.vmem [#allocation3], %s630
      %vm632 = vcmask 257024
      %633 = vst.msk [vmem:[%s631] sm:$0xf] %vm632, %v629
    $region50: #{tpu_custom_call.1} parent=1 // loop_footer
      %s154 = sadd.s32 1, %s150
    $region51: #{tpu_custom_call.1} parent=1 // loop_footer_branch
      %149 = sbr.rel target = $region47
    $region52: #{tpu_custom_call.1} parent=1 // loop_exit
      _
    %v634 = vld [vmem:[%s5] sm:$0x1]
    %v635 = vld [vmem:[%s5 + $0x1] sm:$0x1]
    %v636 = vld [vmem:[%s5 + $0x2] sm:$0x1]
    %v637 = vld [vmem:[%s5 + $0x3] sm:$0x1]
    %v638 = vld [vmem:[%s5 + $0x4] sm:$0x1]
    %v639 = vld [vmem:[%s5 + $0x5] sm:$0x1]
    %v640 = vld [vmem:[#allocation3] sm:$0xf]
    %v641 = vld [vmem:[#allocation3 + $0x4] sm:$0xf]
    %v642 = vld [vmem:[%s4] sm:$0xf]
    %v643 = vld [vmem:[%s4 + $0x4] sm:$0xf]
    %v644 = vld [vmem:[%s4 + $0x8] sm:$0xf]
    %v645 = vld [vmem:[%s4 + $0xc] sm:$0xf]
    %v646 = vlaneseq
    %v647 = vshrl.u32 %v646, 7
    %v648 = vsub.s32 0, %v647
    %v649 = vrot.slane %v634, %v648
    %v652 = vunpack.c.l.b16 %v640
    %v653 = vunpack.c.l.b16 %v641
    %v654 = vpack.c.b16 %v653, %v652
    %v659 = vunpack.c.l.b16 %v642
    %v660 = vunpack.c.l.b16 %v643
    %v661 = vunpack.c.l.b16 %v644
    %v662 = vunpack.c.l.b16 %v645
    %v663 = vpack.c.b16 %v660, %v659
    %v664 = vpack.c.b16 %v662, %v661
    %v668 = vsel %vm86, %v654, 0
    %670 = vmatprep.subr.bf16.mxu0 0
    %671 = vmatpush1.bf16.msra.mxu0 0
    %672 = vmatprep.subr.bf16.mxu0 0
    %673 = vmatpush1.bf16.msra.mxu0 0
    %674 = vmatprep.subr.bf16.mxu0 0
    %675 = vmatpush1.bf16.msra.mxu0 0
    %676 = vmatprep.subr.bf16.mxu0 0
    %677 = vmatpush1.bf16.msra.mxu0 0
    %678 = vmatprep.subr.bf16.mxu0 0
    %679 = vmatpush1.bf16.msra.mxu0 0
    %680 = vmatprep.subr.bf16.mxu0 0
    %681 = vmatpush1.bf16.msra.mxu0 0
    %682 = vmatprep.subr.bf16.mxu0 0
    %683 = vmatpush1.bf16.msra.mxu0 %v664
    %684 = vmatprep.subr.bf16.mxu0 0
    %685 = vmatpush1.bf16.msra.mxu0 %v663
    %686 = vmatprep.subr.bf16.mxu0 0
    %687 = vmatpush2.bf16.msra.mxu0 0
    %688 = vmatprep.subr.bf16.mxu0 0
    %689 = vmatpush2.bf16.msra.mxu0 0
    %690 = vmatprep.subr.bf16.mxu0 0
    %691 = vmatpush2.bf16.msra.mxu0 0
    %692 = vmatprep.subr.bf16.mxu0 0
    %693 = vmatpush2.bf16.msra.mxu0 0
    %694 = vmatprep.subr.bf16.mxu0 0
    %695 = vmatpush2.bf16.msra.mxu0 0
    %696 = vmatprep.subr.bf16.mxu0 0
    %697 = vmatpush2.bf16.msra.mxu0 0
    %698 = vmatprep.subr.bf16.mxu0 0
    %699 = vmatpush2.bf16.msra.mxu0 0
    %700 = vmatprep.subr.bf16.mxu0 0
    %701 = vmatpush2.bf16.msra.mxu0 0
    %702 = vmatprep.mubr.bf16.mxu0 0
    %703 = vmatmul.mubr.bf16.gmra.mxu0 %v668
    %v704 = vpop.f32.mrf.mxu0
    %v705 = vadd.f32 %v649, %v704
    %v706 = vpop.f32.mrf.mxu0
    %v707 = vpop.f32.mrf.mxu0
    %v708 = vadd.f32 %v649, %v707
    %v709 = vpop.f32.mrf.mxu0
    %710 = vdwg.mxu0
    %v711 = vadd.f32 %v60, %v705
    %v712 = vadd.f32 %v61, %v708
    %v713 = vsel %vm86, %v711, 0.0
    %714 = vadd.xlane.f32.xlu0 %v713
    %v715 = vpop.xlane.xlu0 %714
    %v716 = vsel %vm86, %v712, 0.0
    %717 = vadd.xlane.f32.xlu0 %v716
    %v718 = vpop.xlane.xlu0 %717
    %v719 = vrcp.pop 32.0
    %v720 = vmul.f32 %v715, %v719
    %v721 = vmul.f32 %v718, %v719
    %v722 = vsub.f32 %v711, %v720
    %v723 = vsub.f32 %v712, %v721
    %v724 = vmul.f32 %v722, %v722
    %v725 = vmul.f32 %v723, %v723
    %v726 = vsel %vm86, %v724, 0.0
    %727 = vadd.xlane.f32.xlu0 %v726
    %v728 = vpop.xlane.xlu0 %727
    %v729 = vsel %vm86, %v725, 0.0
    %730 = vadd.xlane.f32.xlu0 %v729
    %v731 = vpop.xlane.xlu0 %730
    %v732 = vmul.f32 %v728, %v719
    %v733 = vmul.f32 %v731, %v719
    %v734 = vadd.f32 %v732, 1e-05
    %v735 = vadd.f32 %v733, 1e-05
    %v736 = vrsqrt.pop %v734
    %v737 = vrsqrt.pop %v735
    %v738 = vmul.f32 %v722, %v736
    %v739 = vmul.f32 %v723, %v737
    %v740 = vlaneseq
    %v741 = vshrl.u32 %v740, 7
    %v742 = vsub.s32 0, %v741
    %v743 = vrot.slane %v635, %v742
    %v744 = vmul.f32 %v738, %v743
    %v745 = vmul.f32 %v739, %v743
    %v746 = vlaneseq
    %v747 = vshrl.u32 %v746, 7
    %v748 = vsub.s32 0, %v747
    %v749 = vrot.slane %v636, %v748
    %v750 = vadd.f32 %v744, %v749
    %v751 = vadd.f32 %v745, %v749
    %v752 = vld [vmem:[#allocation7] sm:$0xf]
    %v753 = vld [vmem:[#allocation7 + $0x4] sm:$0xf]
    %v754 = vld [vmem:[#allocation7 + $0x8] sm:$0xf]
    %v755 = vld [vmem:[#allocation7 + $0xc] sm:$0xf]
    %v756 = vpack.c.bf16 %v751, %v750
    %v757 = vld [vmem:[%s7] sm:$0x1]
    %v759 = vlaneseq
    %v760 = vshrl.u32 %v759, 7
    %v761 = vsub.s32 0, %v760
    %v762 = vrot.slane %v757, %v761
    %v768 = vunpack.c.l.b16 %v752
    %v769 = vunpack.c.l.b16 %v753
    %v770 = vunpack.c.l.b16 %v754
    %v771 = vunpack.c.l.b16 %v755
    %v772 = vpack.c.b16 %v769, %v768
    %v773 = vpack.c.b16 %v771, %v770
    %v777 = vsel %vm86, %v756, 0
    %779 = vmatprep.subr.bf16.mxu0 0
    %780 = vmatpush1.bf16.msra.mxu0 0
    %781 = vmatprep.subr.bf16.mxu0 0
    %782 = vmatpush1.bf16.msra.mxu0 0
    %783 = vmatprep.subr.bf16.mxu0 0
    %784 = vmatpush1.bf16.msra.mxu0 0
    %785 = vmatprep.subr.bf16.mxu0 0
    %786 = vmatpush1.bf16.msra.mxu0 0
    %787 = vmatprep.subr.bf16.mxu0 0
    %788 = vmatpush1.bf16.msra.mxu0 0
    %789 = vmatprep.subr.bf16.mxu0 0
    %790 = vmatpush1.bf16.msra.mxu0 0
    %791 = vmatprep.subr.bf16.mxu0 0
    %792 = vmatpush1.bf16.msra.mxu0 %v773
    %793 = vmatprep.subr.bf16.mxu0 0
    %794 = vmatpush1.bf16.msra.mxu0 %v772
    %795 = vmatprep.subr.bf16.mxu0 0
    %796 = vmatpush2.bf16.msra.mxu0 0
    %797 = vmatprep.subr.bf16.mxu0 0
    %798 = vmatpush2.bf16.msra.mxu0 0
    %799 = vmatprep.subr.bf16.mxu0 0
    %800 = vmatpush2.bf16.msra.mxu0 0
    %801 = vmatprep.subr.bf16.mxu0 0
    %802 = vmatpush2.bf16.msra.mxu0 0
    %803 = vmatprep.subr.bf16.mxu0 0
    %804 = vmatpush2.bf16.msra.mxu0 0
    %805 = vmatprep.subr.bf16.mxu0 0
    %806 = vmatpush2.bf16.msra.mxu0 0
    %807 = vmatprep.subr.bf16.mxu0 0
    %808 = vmatpush2.bf16.msra.mxu0 0
    %809 = vmatprep.subr.bf16.mxu0 0
    %810 = vmatpush2.bf16.msra.mxu0 0
    %811 = vmatprep.mubr.bf16.mxu0 0
    %812 = vmatmul.mubr.bf16.gmra.mxu0 %v777
    %v813 = vpop.f32.mrf.mxu0
    %v814 = vadd.f32 %v762, %v813
    %v815 = vpop.f32.mrf.mxu0
    %v816 = vpop.f32.mrf.mxu0
    %v817 = vadd.f32 %v762, %v816
    %v818 = vpop.f32.mrf.mxu0
    %819 = vdwg.mxu0
    %v820 = vmax.f32 %v814, 0.0
    %v821 = vmax.f32 %v817, 0.0
    %v822 = vld [vmem:[%s8] sm:$0xf]
    %v823 = vld [vmem:[%s8 + $0x4] sm:$0xf]
    %v824 = vld [vmem:[%s8 + $0x8] sm:$0xf]
    %v825 = vld [vmem:[%s8 + $0xc] sm:$0xf]
    %v826 = vld [vmem:[%s8 + $0x10] sm:$0xf]
    %v827 = vld [vmem:[%s8 + $0x14] sm:$0xf]
    %v828 = vld [vmem:[%s8 + $0x18] sm:$0xf]
    %v829 = vld [vmem:[%s8 + $0x1c] sm:$0xf]
    %v830 = vpack.c.bf16 %v821, %v820
    %v831 = vlaneseq
    %v832 = vshrl.u32 %v831, 7
    %v833 = vsub.s32 0, %v832
    %v834 = vrot.slane %v637, %v833
    %v843 = vunpack.c.l.b16 %v822
    %v844 = vunpack.c.l.b16 %v823
    %v845 = vunpack.c.l.b16 %v824
    %v846 = vunpack.c.l.b16 %v825
    %v847 = vunpack.c.l.b16 %v826
    %v848 = vunpack.c.l.b16 %v827
    %v849 = vunpack.c.l.b16 %v828
    %v850 = vunpack.c.l.b16 %v829
    %v851 = vpack.c.b16 %v844, %v843
    %v852 = vpack.c.b16 %v846, %v845
    %v853 = vpack.c.b16 %v848, %v847
    %v854 = vpack.c.b16 %v850, %v849
    %vm859 = vcmask 523264
    %v861 = vsel %vm859, %v830, 0
    %863 = vmatprep.subr.bf16.mxu0 0
    %864 = vmatpush1.bf16.msra.mxu0 0
    %865 = vmatprep.subr.bf16.mxu0 0
    %866 = vmatpush1.bf16.msra.mxu0 0
    %867 = vmatprep.subr.bf16.mxu0 0
    %868 = vmatpush1.bf16.msra.mxu0 0
    %869 = vmatprep.subr.bf16.mxu0 0
    %870 = vmatpush1.bf16.msra.mxu0 0
    %871 = vmatprep.subr.bf16.mxu0 0
    %872 = vmatpush1.bf16.msra.mxu0 %v854
    %873 = vmatprep.subr.bf16.mxu0 0
    %874 = vmatpush1.bf16.msra.mxu0 %v853
    %875 = vmatprep.subr.bf16.mxu0 0
    %876 = vmatpush1.bf16.msra.mxu0 %v852
    %877 = vmatprep.subr.bf16.mxu0 0
    %878 = vmatpush1.bf16.msra.mxu0 %v851
    %879 = vmatprep.subr.bf16.mxu0 0
    %880 = vmatpush2.bf16.msra.mxu0 0
    %881 = vmatprep.subr.bf16.mxu0 0
    %882 = vmatpush2.bf16.msra.mxu0 0
    %883 = vmatprep.subr.bf16.mxu0 0
    %884 = vmatpush2.bf16.msra.mxu0 0
    %885 = vmatprep.subr.bf16.mxu0 0
    %886 = vmatpush2.bf16.msra.mxu0 0
    %887 = vmatprep.subr.bf16.mxu0 0
    %888 = vmatpush2.bf16.msra.mxu0 0
    %889 = vmatprep.subr.bf16.mxu0 0
    %890 = vmatpush2.bf16.msra.mxu0 0
    %891 = vmatprep.subr.bf16.mxu0 0
    %892 = vmatpush2.bf16.msra.mxu0 0
    %893 = vmatprep.subr.bf16.mxu0 0
    %894 = vmatpush2.bf16.msra.mxu0 0
    %895 = vmatprep.mubr.bf16.mxu0 0
    %896 = vmatmul.mubr.bf16.gmra.mxu0 %v861
    %v897 = vpop.f32.mrf.mxu0
    %v898 = vadd.f32 %v834, %v897
    %v899 = vpop.f32.mrf.mxu0
    %v900 = vpop.f32.mrf.mxu0
    %v901 = vadd.f32 %v834, %v900
    %v902 = vpop.f32.mrf.mxu0
    %903 = vdwg.mxu0
    %v904 = vadd.f32 %v750, %v898
    %v905 = vadd.f32 %v751, %v901
    %v906 = vsel %vm86, %v904, 0.0
    %907 = vadd.xlane.f32.xlu0 %v906
    %v908 = vpop.xlane.xlu0 %907
    %v909 = vsel %vm86, %v905, 0.0
    %910 = vadd.xlane.f32.xlu0 %v909
    %v911 = vpop.xlane.xlu0 %910
    %v912 = vmul.f32 %v908, %v719
    %v913 = vmul.f32 %v911, %v719
    %v914 = vsub.f32 %v904, %v912
    %v915 = vsub.f32 %v905, %v913
    %v916 = vmul.f32 %v914, %v914
    %v917 = vmul.f32 %v915, %v915
    %v918 = vsel %vm86, %v916, 0.0
    %919 = vadd.xlane.f32.xlu0 %v918
    %v920 = vpop.xlane.xlu0 %919
    %v921 = vsel %vm86, %v917, 0.0
    %922 = vadd.xlane.f32.xlu0 %v921
    %v923 = vpop.xlane.xlu0 %922
    %v924 = vmul.f32 %v920, %v719
    %v925 = vmul.f32 %v923, %v719
    %v926 = vadd.f32 %v924, 1e-05
    %v927 = vadd.f32 %v925, 1e-05
    %v928 = vrsqrt.pop %v926
    %v929 = vrsqrt.pop %v927
    %v930 = vmul.f32 %v914, %v928
    %v931 = vmul.f32 %v915, %v929
    %v932 = vlaneseq
    %v933 = vshrl.u32 %v932, 7
    %v934 = vsub.s32 0, %v933
    %v935 = vrot.slane %v638, %v934
    %v936 = vmul.f32 %v930, %v935
    %v937 = vmul.f32 %v931, %v935
    %v938 = vlaneseq
    %v939 = vshrl.u32 %v938, 7
    %v940 = vsub.s32 0, %v939
    %v941 = vrot.slane %v639, %v940
    %v942 = vadd.f32 %v936, %v941
    %v943 = vadd.f32 %v937, %v941
    %944 = vst.msk [vmem:[#allocation9] sm:$0xff] %vm86, %v942
    %945 = vst.msk [vmem:[#allocation9 + $0x8] sm:$0xff] %vm86, %v943
    // Predicated region
    $region53: #{tpu_custom_call.1} parent=1 // pred_check
      _
    $region54: #{tpu_custom_call.1} parent=1 // pred_check_branch
      %947 = sbr.rel (0) target = $region56
    $region55: #{tpu_custom_call.1} parent=1 // pred_region
      %s949 = ssub.s32 256, 256
      %950 = vsyncadd [#allocation6], %s949
      %s951 = sshll.u32 [#allocation9], 4
      %s952 = int_to_ptr.vmem [resolvable:$true] %s951
      %957 = dma.vmem_to_hbm [thread:$0]  %s952, 256, %s9, [#allocation6], 128, 128, 8
    $region56: #{tpu_custom_call.1} parent=1 // pred_fallthru
      _
    // Predicated region
    $region57: #{tpu_custom_call.1} parent=1 // pred_check
      _
    $region58: #{tpu_custom_call.1} parent=1 // pred_check_branch
      %959 = sbr.rel (0) target = $region60
    $region59: #{tpu_custom_call.1} parent=1 // pred_region
      %960 = dma.done [#allocation6], 256
    $region60: #{tpu_custom_call.1} parent=1 // pred_fallthru
      _
    %961 = vsyncpa [#allocation5], 1
    %962 = vsyncpa [#allocation8], 1
    %963 = vsyncpa [#allocation6], 1

// kernel: tpu_custom_call.1
$region0: #{tpu_custom_call.1}
  #allocation0 [shape = 'u32[]', space=smem, size = 0x4, offset = 0x4, fixed_abs, tag = 'smem constant byte address 0x4 - core index']
  #allocation1 [shape = 'u32[144,128]{1,0:T(1,128)}', space=vmem, size = 0x12000, scoped, tag = 'internal scratch']
  #allocation2 [shape = 'bf16[16,96]{1,0:T(8,128)(2,1)}', space=vmem, size = 0x1000, scoped, tag = 'scratch operand']
  #allocation3 [shape = 'bf16[16,32]{1,0:T(8,128)(2,1)}', space=vmem, size = 0x1000, scoped, tag = 'scratch operand']
  %s0 = inlined_call_operand.vmem [shape: f32[16,32], index: 0, kind: input, shape index: {}]
  %s1 = inlined_call_operand.hbm [shape: f32[2,8], index: 1, kind: input, shape index: {}]
  %s2 = inlined_call_operand.vmem [shape: bf16[32,96], index: 2, kind: input, shape index: {}]
  %s3 = inlined_call_operand.vmem [shape: f32[1,96], index: 3, kind: input, shape index: {}]
  %s4 = inlined_call_operand.vmem [shape: bf16[32,32], index: 4, kind: input, shape index: {}]
  %s5 = inlined_call_operand.vmem [shape: f32[6,32], index: 5, kind: input, shape index: {}]
  %s6 = inlined_call_operand.hbm [shape: bf16[32,64], index: 6, kind: input, shape index: {}]
  %s7 = inlined_call_operand.vmem [shape: f32[1,64], index: 7, kind: input, shape index: {}]
  %s8 = inlined_call_operand.vmem [shape: bf16[64,32], index: 8, kind: input, shape index: {}]
  %s9 = inlined_call_operand.hbm [shape: f32[16,32], index: 9, kind: output, shape index: {}]
  %s10 = sld [smem:[#allocation0]]
  $region61: #{tpu_custom_call.1} parent=0
    _
  %s12 = ssub.s32 1, %s10
  %s13 = scalar_select 0, %s12, %s10
  $region1: #{tpu_custom_call.1} parent=0
    #allocation4 [shape = 'u8[1024]{0}', space=vmem, size = 0x400, scoped, tag = 'input window, operand 1, single buffered']
    #allocation5 [shape = 's32[1]{0}', space=sflag, size = 0x4, scoped, tag = 'scoped memory for tpu_custom_call.1']
    #allocation6 [shape = 's32[1]{0}', space=sflag, size = 0x4, scoped, tag = 'scoped memory for tpu_custom_call.1']
    #allocation7 [shape = 'u8[8192]{0}', space=vmem, size = 0x2000, scoped, tag = 'input window, operand 6, single buffered']
    #allocation8 [shape = 's32[1]{0}', space=sflag, size = 0x4, scoped, tag = 'scoped memory for tpu_custom_call.1']
    #allocation9 [shape = 'u8[8192]{0}', space=vmem, size = 0x2000, scoped, tag = 'output window, operand 0, single buffered']
    %14 = vsyncpa [#allocation5], 0
    %15 = vsyncpa [#allocation8], 0
    %16 = vsyncpa [#allocation6], 0
    // Predicated region
    $region2: #{tpu_custom_call.1} parent=1 // pred_check
      _
    $region3: #{tpu_custom_call.1} parent=1 // pred_check_branch
      %18 = sbr.rel (0) target = $region5
    $region4: #{tpu_custom_call.1} parent=1 // pred_region
      _
    $region5: #{tpu_custom_call.1} parent=1 // pred_fallthru
      _
    // Predicated region
    $region6: #{tpu_custom_call.1} parent=1 // pred_check
      _
    $region7: #{tpu_custom_call.1} parent=1 // pred_check_branch
      %20 = sbr.rel (0) target = $region9
    $region8: #{tpu_custom_call.1} parent=1 // pred_region
      %s22 = ssub.s32 32, 32
      %23 = vsyncadd [#allocation5], %s22
      %s25 = sshll.u32 [#allocation4], 4
      %s26 = int_to_ptr.vmem [resolvable:$true] %s25
      %28 = dma.hbm_to_vmem [thread:$0]  %s1, 32, %s26, [#allocation5]
    $region9: #{tpu_custom_call.1} parent=1 // pred_fallthru
      _
    // Predicated region
    $region10: #{tpu_custom_call.1} parent=1 // pred_check
      _
    $region11: #{tpu_custom_call.1} parent=1 // pred_check_branch
      %30 = sbr.rel (0) target = $region13
    $region12: #{tpu_custom_call.1} parent=1 // pred_region
      _
    $region13: #{tpu_custom_call.1} parent=1 // pred_fallthru
      _
    // Predicated region
    $region14: #{tpu_custom_call.1} parent=1 // pred_check
      _
    $region15: #{tpu_custom_call.1} parent=1 // pred_check_branch
      %32 = sbr.rel (0) target = $region17
    $region16: #{tpu_custom_call.1} parent=1 // pred_region
      _
    $region17: #{tpu_custom_call.1} parent=1 // pred_fallthru
      _
    // Predicated region
    $region18: #{tpu_custom_call.1} parent=1 // pred_check
      _
    $region19: #{tpu_custom_call.1} parent=1 // pred_check_branch
      %34 = sbr.rel (0) target = $region21
    $region20: #{tpu_custom_call.1} parent=1 // pred_region
      _
    $region21: #{tpu_custom_call.1} parent=1 // pred_fallthru
      _
    // Predicated region
    $region22: #{tpu_custom_call.1} parent=1 // pred_check
      _
    $region23: #{tpu_custom_call.1} parent=1 // pred_check_branch
      %36 = sbr.rel (0) target = $region25
    $region24: #{tpu_custom_call.1} parent=1 // pred_region
      _
    $region25: #{tpu_custom_call.1} parent=1 // pred_fallthru
      _
    // Predicated region
    $region26: #{tpu_custom_call.1} parent=1 // pred_check
      _
    $region27: #{tpu_custom_call.1} parent=1 // pred_check_branch
      %38 = sbr.rel (0) target = $region29
    $region28: #{tpu_custom_call.1} parent=1 // pred_region
      %s40 = ssub.s32 256, 256
      %41 = vsyncadd [#allocation8], %s40
      %s42 = sshll.u32 [#allocation7], 4
      %s43 = int_to_ptr.vmem [resolvable:$true] %s42
      %48 = dma.hbm_to_vmem [thread:$0]  %s6, 256, %s43, [#allocation8], 64, 64, 4
    $region29: #{tpu_custom_call.1} parent=1 // pred_fallthru
      _
    // Predicated region
    $region30: #{tpu_custom_call.1} parent=1 // pred_check
      _
    $region31: #{tpu_custom_call.1} parent=1 // pred_check_branch
      %50 = sbr.rel (0) target = $region33
    $region32: #{tpu_custom_call.1} parent=1 // pred_region
      _
    $region33: #{tpu_custom_call.1} parent=1 // pred_fallthru
      _
    // Predicated region
    $region34: #{tpu_custom_call.1} parent=1 // pred_check
      _
    $region35: #{tpu_custom_call.1} parent=1 // pred_check_branch
      %52 = sbr.rel (0) target = $region37
    $region36: #{tpu_custom_call.1} parent=1 // pred_region
      _
    $region37: #{tpu_custom_call.1} parent=1 // pred_fallthru
      _
    // Predicated region
    $region38: #{tpu_custom_call.1} parent=1 // pred_check
      _
    $region39: #{tpu_custom_call.1} parent=1 // pred_check_branch
      %54 = sbr.rel (0) target = $region41
    $region40: #{tpu_custom_call.1} parent=1 // pred_region
      %55 = dma.done [#allocation5], 32
    $region41: #{tpu_custom_call.1} parent=1 // pred_fallthru
      _
    // Predicated region
    $region42: #{tpu_custom_call.1} parent=1 // pred_check
      _
    $region43: #{tpu_custom_call.1} parent=1 // pred_check_branch
      %57 = sbr.rel (0) target = $region45
    $region44: #{tpu_custom_call.1} parent=1 // pred_region
      %58 = dma.done [#allocation8], 256
    $region45: #{tpu_custom_call.1} parent=1 // pred_fallthru
      _
    %v60 = vld [vmem:[%s0] sm:$0xff]
    %v61 = vld [vmem:[%s0 + $0x8] sm:$0xff]
    %v62 = vld [vmem:[%s2] sm:$0xf]
    %v63 = vld [vmem:[%s2 + $0x4] sm:$0xf]
    %v64 = vld [vmem:[%s2 + $0x8] sm:$0xf]
    %v65 = vld [vmem:[%s2 + $0xc] sm:$0xf]
    %v66 = vpack.c.bf16 %v61, %v60
    %v67 = vld [vmem:[%s3] sm:$0x1]
    %v69 = vlaneseq
    %v70 = vshrl.u32 %v69, 7
    %v71 = vsub.s32 0, %v70
    %v72 = vrot.slane %v67, %v71
    %v78 = vunpack.c.l.b16 %v62
    %v79 = vunpack.c.l.b16 %v63
    %v80 = vunpack.c.l.b16 %v64
    %v81 = vunpack.c.l.b16 %v65
    %v82 = vpack.c.b16 %v79, %v78
    %v83 = vpack.c.b16 %v81, %v80
    %vm86 = vcmask 261120
    %v88 = vsel %vm86, %v66, 0
    %90 = vmatprep.subr.bf16.mxu0 0
    %91 = vmatpush1.bf16.msra.mxu0 0
    %92 = vmatprep.subr.bf16.mxu0 0
    %93 = vmatpush1.bf16.msra.mxu0 0
    %94 = vmatprep.subr.bf16.mxu0 0
    %95 = vmatpush1.bf16.msra.mxu0 0
    %96 = vmatprep.subr.bf16.mxu0 0
    %97 = vmatpush1.bf16.msra.mxu0 0
    %98 = vmatprep.subr.bf16.mxu0 0
    %99 = vmatpush1.bf16.msra.mxu0 0
    %100 = vmatprep.subr.bf16.mxu0 0
    %101 = vmatpush1.bf16.msra.mxu0 0
    %102 = vmatprep.subr.bf16.mxu0 0
    %103 = vmatpush1.bf16.msra.mxu0 %v83
    %104 = vmatprep.subr.bf16.mxu0 0
    %105 = vmatpush1.bf16.msra.mxu0 %v82
    %106 = vmatprep.subr.bf16.mxu0 0
    %107 = vmatpush2.bf16.msra.mxu0 0
    %108 = vmatprep.subr.bf16.mxu0 0
    %109 = vmatpush2.bf16.msra.mxu0 0
    %110 = vmatprep.subr.bf16.mxu0 0
    %111 = vmatpush2.bf16.msra.mxu0 0
    %112 = vmatprep.subr.bf16.mxu0 0
    %113 = vmatpush2.bf16.msra.mxu0 0
    %114 = vmatprep.subr.bf16.mxu0 0
    %115 = vmatpush2.bf16.msra.mxu0 0
    %116 = vmatprep.subr.bf16.mxu0 0
    %117 = vmatpush2.bf16.msra.mxu0 0
    %118 = vmatprep.subr.bf16.mxu0 0
    %119 = vmatpush2.bf16.msra.mxu0 0
    %120 = vmatprep.subr.bf16.mxu0 0
    %121 = vmatpush2.bf16.msra.mxu0 0
    %122 = vmatprep.mubr.bf16.mxu0 0
    %123 = vmatmul.mubr.bf16.gmra.mxu0 %v88
    %v124 = vpop.f32.mrf.mxu0
    %v125 = vadd.f32 %v72, %v124
    %v126 = vpop.f32.mrf.mxu0
    %v127 = vpop.f32.mrf.mxu0
    %v128 = vadd.f32 %v72, %v127
    %v129 = vpop.f32.mrf.mxu0
    %130 = vdwg.mxu0
    %v131 = vpack.c.bf16 %v128, %v125
    %v133 = vunpack.c.l.b16 %v131
    %v134 = vunpack.c.h.b16 %v131
    %v135 = vpack.c.b16 %v133, %v133
    %v136 = vpack.c.b16 %v134, %v134
    %vm139 = vcmask 781312
    %140 = vst.msk [vmem:[#allocation2] sm:$0xf] %vm139, %v135
    %141 = vst.msk [vmem:[#allocation2 + $0x4] sm:$0xf] %vm139, %v136
    %v142 = vlaneseq
    %v143 = vshrl.u32 %v142, 7
    %v144 = vlaneseq
    %v145 = vand.u32 %v144, 127
    %vm146 = vcmp.gt.s32.totalorder %v145, %v143
    %v147 = vsel %vm146, -1e+30, 0.0
    %s148 = smul.u32 0, 2
    loop: start=0, step=1, limit=2
    $region46: #{tpu_custom_call.1} parent=1 // loop_pre_header
      _
    $region47: #{tpu_custom_call.1} parent=1 // loop_header
      %s150 = sphi 0, %s154
      %p151 = scmp.ge.s32.totalorder %s150, 2
    $region48: #{tpu_custom_call.1} parent=1 // loop_header_branch
      %153 = sbr.rel (%p151) target = $region52
    $region49: #{tpu_custom_call.1} parent=1 // loop_body
      %s155 = smul.u32 %s150, 8
      %s156 = sadd.s32 %s148, %s150
      %s157 = scalar_lea.vmem [#allocation4], %s156
      %v158 = vld [vmem:[%s157] sm:$0x1]
      %v159 = vlaneseq
      %v160 = vshrl.u32 %v159, 7
      %v161 = vsub.s32 0, %v160
      %v162 = vrot.slane %v158, %v161
      %v163 = vadd.f32 %v147, %v162
      %s164 = sshra.s32 %s155, 3
      %s165 = sand.u32 %s155, 7
      %s166 = smul.addr %s164, 4
      %s167 = scalar_lea.vmem [#allocation2], %s166
      %v168 = vld [vmem:[%s167] sm:$0xf]
      %v170 = vunpack.c.l.b16 %v168
      %v171 = vpack.c.b16 %v170, %v170
      %172 = vrot.lane.b32.xlu0 %v171, 96
      %v173 = vpop.permute.xlu0 %172
      %vm174 = vcmask 64512
      %v176 = vsel %vm174, %v168, 0
      %v179 = vsel %vm174, %v173, 0
      %181 = vmatprep.subr.bf16.mxu0 0
      %182 = vmatpush1.bf16.xpose.msra.mxu0 0
      %183 = vmatprep.subr.bf16.mxu0 0
      %184 = vmatpush1.bf16.xpose.msra.mxu0 0
      %185 = vmatprep.subr.bf16.mxu0 0
      %186 = vmatpush1.bf16.xpose.msra.mxu0 0
      %187 = vmatprep.subr.bf16.mxu0 0
      %188 = vmatpush1.bf16.xpose.msra.mxu0 0
      %189 = vmatprep.subr.bf16.mxu0 0
      %190 = vmatpush1.bf16.xpose.msra.mxu0 0
      %191 = vmatprep.subr.bf16.mxu0 0
      %192 = vmatpush1.bf16.xpose.msra.mxu0 0
      %193 = vmatprep.subr.bf16.mxu0 0
      %194 = vmatpush1.bf16.xpose.msra.mxu0 0
      %195 = vmatprep.subr.bf16.mxu0 0
      %196 = vmatpush1.bf16.xpose.msra.mxu0 %v179
      %197 = vmatprep.subr.bf16.mxu0 0
      %198 = vmatpush2.bf16.xpose.msra.mxu0 0
      %199 = vmatprep.subr.bf16.mxu0 0
      %200 = vmatpush2.bf16.xpose.msra.mxu0 0
      %201 = vmatprep.subr.bf16.mxu0 0
      %202 = vmatpush2.bf16.xpose.msra.mxu0 0
      %203 = vmatprep.subr.bf16.mxu0 0
      %204 = vmatpush2.bf16.xpose.msra.mxu0 0
      %205 = vmatprep.subr.bf16.mxu0 0
      %206 = vmatpush2.bf16.xpose.msra.mxu0 0
      %207 = vmatprep.subr.bf16.mxu0 0
      %208 = vmatpush2.bf16.xpose.msra.mxu0 0
      %209 = vmatprep.subr.bf16.mxu0 0
      %210 = vmatpush2.bf16.xpose.msra.mxu0 0
      %211 = vmatprep.subr.bf16.mxu0 0
      %212 = vmatpush2.bf16.xpose.msra.mxu0 0
      %213 = vmatprep.mubr.bf16.mxu0 0
      %214 = vmatmul.mubr.bf16.gmra.mxu0 %v176
      %v215 = vpop.f32.mrf.mxu0
      %v216 = vadd.f32 %v163, %v215
      %v217 = vpop.f32.mrf.mxu0
      %v218 = vpop.f32.mrf.mxu0
      %v219 = vpop.f32.mrf.mxu0
      %220 = vdwg.mxu0
      %v221 = vsel %vm174, %v216, -inf
      %222 = vmax.xlane.f32.xlu0 %v221
      %v223 = vpop.xlane.xlu0 %222
      %v224 = vsub.f32 %v216, %v223
      %v225 = vmul.f32 %v224, 1.442695
      %v226 = vpow.pop %v225
      %v227 = vsel %vm174, %v226, 0.0
      %228 = vadd.xlane.f32.xlu0 %v227
      %v229 = vpop.xlane.xlu0 %228
      %v230 = vrcp.pop %v229
      %v231 = vmul.f32 %v226, %v230
      %v232 = vpack.c.bf16 %v231, %v231
      %233 = vrot.lane.b32.xlu0 %v171, 64
      %v234 = vpop.permute.xlu0 %233
      %v236 = vsel %vm174, %v232, 0
      %vm238 = vcmask 1043456
      %v240 = vsel %vm238, %v234, 0
      %242 = vmatprep.subr.bf16.mxu0 0
      %243 = vmatpush1.bf16.msra.mxu0 0
      %244 = vmatprep.subr.bf16.mxu0 0
      %245 = vmatpush1.bf16.msra.mxu0 0
      %246 = vmatprep.subr.bf16.mxu0 0
      %247 = vmatpush1.bf16.msra.mxu0 0
      %248 = vmatprep.subr.bf16.mxu0 0
      %249 = vmatpush1.bf16.msra.mxu0 0
      %250 = vmatprep.subr.bf16.mxu0 0
      %251 = vmatpush1.bf16.msra.mxu0 0
      %252 = vmatprep.subr.bf16.mxu0 0
      %253 = vmatpush1.bf16.msra.mxu0 0
      %254 = vmatprep.subr.bf16.mxu0 0
      %255 = vmatpush1.bf16.msra.mxu0 0
      %256 = vmatprep.subr.bf16.mxu0 0
      %257 = vmatpush1.bf16.msra.mxu0 %v240
      %258 = vmatprep.subr.bf16.mxu0 0
      %259 = vmatpush2.bf16.msra.mxu0 0
      %260 = vmatprep.subr.bf16.mxu0 0
      %261 = vmatpush2.bf16.msra.mxu0 0
      %262 = vmatprep.subr.bf16.mxu0 0
      %263 = vmatpush2.bf16.msra.mxu0 0
      %264 = vmatprep.subr.bf16.mxu0 0
      %265 = vmatpush2.bf16.msra.mxu0 0
      %266 = vmatprep.subr.bf16.mxu0 0
      %267 = vmatpush2.bf16.msra.mxu0 0
      %268 = vmatprep.subr.bf16.mxu0 0
      %269 = vmatpush2.bf16.msra.mxu0 0
      %270 = vmatprep.subr.bf16.mxu0 0
      %271 = vmatpush2.bf16.msra.mxu0 0
      %272 = vmatprep.subr.bf16.mxu0 0
      %273 = vmatpush2.bf16.msra.mxu0 0
      %274 = vmatprep.mubr.bf16.mxu0 0
      %275 = vmatmul.mubr.bf16.gmra.mxu0 %v236
      %v276 = vpop.f32.mrf.mxu0
      %v277 = vadd.f32 0.0, %v276
      %v278 = vpop.f32.mrf.mxu0
      %v279 = vpop.f32.mrf.mxu0
      %v280 = vpop.f32.mrf.mxu0
      %281 = vdwg.mxu0
      %282 = vrot.lane.b32.xlu0 %v171, 120
      %v283 = vpop.permute.xlu0 %282
      %284 = vrot.lane.b32.xlu0 %v171, 88
      %v285 = vpop.permute.xlu0 %284
      %v287 = vsel %vm174, %v283, 0
      %v290 = vsel %vm174, %v285, 0
      %292 = vmatprep.subr.bf16.mxu0 0
      %293 = vmatpush1.bf16.xpose.msra.mxu0 0
      %294 = vmatprep.subr.bf16.mxu0 0
      %295 = vmatpush1.bf16.xpose.msra.mxu0 0
      %296 = vmatprep.subr.bf16.mxu0 0
      %297 = vmatpush1.bf16.xpose.msra.mxu0 0
      %298 = vmatprep.subr.bf16.mxu0 0
      %299 = vmatpush1.bf16.xpose.msra.mxu0 0
      %300 = vmatprep.subr.bf16.mxu0 0
      %301 = vmatpush1.bf16.xpose.msra.mxu0 0
      %302 = vmatprep.subr.bf16.mxu0 0
      %303 = vmatpush1.bf16.xpose.msra.mxu0 0
      %304 = vmatprep.subr.bf16.mxu0 0
      %305 = vmatpush1.bf16.xpose.msra.mxu0 0
      %306 = vmatprep.subr.bf16.mxu0 0
      %307 = vmatpush1.bf16.xpose.msra.mxu0 %v290
      %308 = vmatprep.subr.bf16.mxu0 0
      %309 = vmatpush2.bf16.xpose.msra.mxu0 0
      %310 = vmatprep.subr.bf16.mxu0 0
      %311 = vmatpush2.bf16.xpose.msra.mxu0 0
      %312 = vmatprep.subr.bf16.mxu0 0
      %313 = vmatpush2.bf16.xpose.msra.mxu0 0
      %314 = vmatprep.subr.bf16.mxu0 0
      %315 = vmatpush2.bf16.xpose.msra.mxu0 0
      %316 = vmatprep.subr.bf16.mxu0 0
      %317 = vmatpush2.bf16.xpose.msra.mxu0 0
      %318 = vmatprep.subr.bf16.mxu0 0
      %319 = vmatpush2.bf16.xpose.msra.mxu0 0
      %320 = vmatprep.subr.bf16.mxu0 0
      %321 = vmatpush2.bf16.xpose.msra.mxu0 0
      %322 = vmatprep.subr.bf16.mxu0 0
      %323 = vmatpush2.bf16.xpose.msra.mxu0 0
      %324 = vmatprep.mubr.bf16.mxu0 0
      %325 = vmatmul.mubr.bf16.gmra.mxu0 %v287
      %v326 = vpop.f32.mrf.mxu0
      %v327 = vadd.f32 %v163, %v326
      %v328 = vpop.f32.mrf.mxu0
      %v329 = vpop.f32.mrf.mxu0
      %v330 = vpop.f32.mrf.mxu0
      %331 = vdwg.mxu0
      %v332 = vsel %vm174, %v327, -inf
      %333 = vmax.xlane.f32.xlu0 %v332
      %v334 = vpop.xlane.xlu0 %333
      %v335 = vsub.f32 %v327, %v334
      %v336 = vmul.f32 %v335, 1.442695
      %v337 = vpow.pop %v336
      %v338 = vsel %vm174, %v337, 0.0
      %339 = vadd.xlane.f32.xlu0 %v338
      %v340 = vpop.xlane.xlu0 %339
      %v341 = vrcp.pop %v340
      %v342 = vmul.f32 %v337, %v341
      %v343 = vpack.c.bf16 %v342, %v342
      %344 = vrot.lane.b32.xlu0 %v171, 56
      %v345 = vpop.permute.xlu0 %344
      %v347 = vsel %vm174, %v343, 0
      %v350 = vsel %vm238, %v345, 0
      %352 = vmatprep.subr.bf16.mxu0 0
      %353 = vmatpush1.bf16.msra.mxu0 0
      %354 = vmatprep.subr.bf16.mxu0 0
      %355 = vmatpush1.bf16.msra.mxu0 0
      %356 = vmatprep.subr.bf16.mxu0 0
      %357 = vmatpush1.bf16.msra.mxu0 0
      %358 = vmatprep.subr.bf16.mxu0 0
      %359 = vmatpush1.bf16.msra.mxu0 0
      %360 = vmatprep.subr.bf16.mxu0 0
      %361 = vmatpush1.bf16.msra.mxu0 0
      %362 = vmatprep.subr.bf16.mxu0 0
      %363 = vmatpush1.bf16.msra.mxu0 0
      %364 = vmatprep.subr.bf16.mxu0 0
      %365 = vmatpush1.bf16.msra.mxu0 0
      %366 = vmatprep.subr.bf16.mxu0 0
      %367 = vmatpush1.bf16.msra.mxu0 %v350
      %368 = vmatprep.subr.bf16.mxu0 0
      %369 = vmatpush2.bf16.msra.mxu0 0
      %370 = vmatprep.subr.bf16.mxu0 0
      %371 = vmatpush2.bf16.msra.mxu0 0
      %372 = vmatprep.subr.bf16.mxu0 0
      %373 = vmatpush2.bf16.msra.mxu0 0
      %374 = vmatprep.subr.bf16.mxu0 0
      %375 = vmatpush2.bf16.msra.mxu0 0
      %376 = vmatprep.subr.bf16.mxu0 0
      %377 = vmatpush2.bf16.msra.mxu0 0
      %378 = vmatprep.subr.bf16.mxu0 0
      %379 = vmatpush2.bf16.msra.mxu0 0
      %380 = vmatprep.subr.bf16.mxu0 0
      %381 = vmatpush2.bf16.msra.mxu0 0
      %382 = vmatprep.subr.bf16.mxu0 0
      %383 = vmatpush2.bf16.msra.mxu0 0
      %384 = vmatprep.mubr.bf16.mxu0 0
      %385 = vmatmul.mubr.bf16.gmra.mxu0 %v347
      %v386 = vpop.f32.mrf.mxu0
      %v387 = vadd.f32 0.0, %v386
      %v388 = vpop.f32.mrf.mxu0
      %v389 = vpop.f32.mrf.mxu0
      %v390 = vpop.f32.mrf.mxu0
      %391 = vdwg.mxu0
      %392 = vrot.lane.b32.xlu0 %v171, 112
      %v393 = vpop.permute.xlu0 %392
      %394 = vrot.lane.b32.xlu0 %v171, 80
      %v395 = vpop.permute.xlu0 %394
      %v397 = vsel %vm174, %v393, 0
      %v400 = vsel %vm174, %v395, 0
      %402 = vmatprep.subr.bf16.mxu0 0
      %403 = vmatpush1.bf16.xpose.msra.mxu0 0
      %404 = vmatprep.subr.bf16.mxu0 0
      %405 = vmatpush1.bf16.xpose.msra.mxu0 0
      %406 = vmatprep.subr.bf16.mxu0 0
      %407 = vmatpush1.bf16.xpose.msra.mxu0 0
      %408 = vmatprep.subr.bf16.mxu0 0
      %409 = vmatpush1.bf16.xpose.msra.mxu0 0
      %410 = vmatprep.subr.bf16.mxu0 0
      %411 = vmatpush1.bf16.xpose.msra.mxu0 0
      %412 = vmatprep.subr.bf16.mxu0 0
      %413 = vmatpush1.bf16.xpose.msra.mxu0 0
      %414 = vmatprep.subr.bf16.mxu0 0
      %415 = vmatpush1.bf16.xpose.msra.mxu0 0
      %416 = vmatprep.subr.bf16.mxu0 0
      %417 = vmatpush1.bf16.xpose.msra.mxu0 %v400
      %418 = vmatprep.subr.bf16.mxu0 0
      %419 = vmatpush2.bf16.xpose.msra.mxu0 0
      %420 = vmatprep.subr.bf16.mxu0 0
      %421 = vmatpush2.bf16.xpose.msra.mxu0 0
      %422 = vmatprep.subr.bf16.mxu0 0
      %423 = vmatpush2.bf16.xpose.msra.mxu0 0
      %424 = vmatprep.subr.bf16.mxu0 0
      %425 = vmatpush2.bf16.xpose.msra.mxu0 0
      %426 = vmatprep.subr.bf16.mxu0 0
      %427 = vmatpush2.bf16.xpose.msra.mxu0 0
      %428 = vmatprep.subr.bf16.mxu0 0
      %429 = vmatpush2.bf16.xpose.msra.mxu0 0
      %430 = vmatprep.subr.bf16.mxu0 0
      %431 = vmatpush2.bf16.xpose.msra.mxu0 0
      %432 = vmatprep.subr.bf16.mxu0 0
      %433 = vmatpush2.bf16.xpose.msra.mxu0 0
      %434 = vmatprep.mubr.bf16.mxu0 0
      %435 = vmatmul.mubr.bf16.gmra.mxu0 %v397
      %v436 = vpop.f32.mrf.mxu0
      %v437 = vadd.f32 %v163, %v436
      %v438 = vpop.f32.mrf.mxu0
      %v439 = vpop.f32.mrf.mxu0
      %v440 = vpop.f32.mrf.mxu0
      %441 = vdwg.mxu0
      %v442 = vsel %vm174, %v437, -inf
      %443 = vmax.xlane.f32.xlu0 %v442
      %v444 = vpop.xlane.xlu0 %443
      %v445 = vsub.f32 %v437, %v444
      %v446 = vmul.f32 %v445, 1.442695
      %v447 = vpow.pop %v446
      %v448 = vsel %vm174, %v447, 0.0
      %449 = vadd.xlane.f32.xlu0 %v448
      %v450 = vpop.xlane.xlu0 %449
      %v451 = vrcp.pop %v450
      %v452 = vmul.f32 %v447, %v451
      %v453 = vpack.c.bf16 %v452, %v452
      %454 = vrot.lane.b32.xlu0 %v171, 48
      %v455 = vpop.permute.xlu0 %454
      %v457 = vsel %vm174, %v453, 0
      %v460 = vsel %vm238, %v455, 0
      %462 = vmatprep.subr.bf16.mxu0 0
      %463 = vmatpush1.bf16.msra.mxu0 0
      %464 = vmatprep.subr.bf16.mxu0 0
      %465 = vmatpush1.bf16.msra.mxu0 0
      %466 = vmatprep.subr.bf16.mxu0 0
      %467 = vmatpush1.bf16.msra.mxu0 0
      %468 = vmatprep.subr.bf16.mxu0 0
      %469 = vmatpush1.bf16.msra.mxu0 0
      %470 = vmatprep.subr.bf16.mxu0 0
      %471 = vmatpush1.bf16.msra.mxu0 0
      %472 = vmatprep.subr.bf16.mxu0 0
      %473 = vmatpush1.bf16.msra.mxu0 0
      %474 = vmatprep.subr.bf16.mxu0 0
      %475 = vmatpush1.bf16.msra.mxu0 0
      %476 = vmatprep.subr.bf16.mxu0 0
      %477 = vmatpush1.bf16.msra.mxu0 %v460
      %478 = vmatprep.subr.bf16.mxu0 0
      %479 = vmatpush2.bf16.msra.mxu0 0
      %480 = vmatprep.subr.bf16.mxu0 0
      %481 = vmatpush2.bf16.msra.mxu0 0
      %482 = vmatprep.subr.bf16.mxu0 0
      %483 = vmatpush2.bf16.msra.mxu0 0
      %484 = vmatprep.subr.bf16.mxu0 0
      %485 = vmatpush2.bf16.msra.mxu0 0
      %486 = vmatprep.subr.bf16.mxu0 0
      %487 = vmatpush2.bf16.msra.mxu0 0
      %488 = vmatprep.subr.bf16.mxu0 0
      %489 = vmatpush2.bf16.msra.mxu0 0
      %490 = vmatprep.subr.bf16.mxu0 0
      %491 = vmatpush2.bf16.msra.mxu0 0
      %492 = vmatprep.subr.bf16.mxu0 0
      %493 = vmatpush2.bf16.msra.mxu0 0
      %494 = vmatprep.mubr.bf16.mxu0 0
      %495 = vmatmul.mubr.bf16.gmra.mxu0 %v457
      %v496 = vpop.f32.mrf.mxu0
      %v497 = vadd.f32 0.0, %v496
      %v498 = vpop.f32.mrf.mxu0
      %v499 = vpop.f32.mrf.mxu0
      %v500 = vpop.f32.mrf.mxu0
      %501 = vdwg.mxu0
      %502 = vrot.lane.b32.xlu0 %v171, 104
      %v503 = vpop.permute.xlu0 %502
      %504 = vrot.lane.b32.xlu0 %v171, 72
      %v505 = vpop.permute.xlu0 %504
      %v507 = vsel %vm174, %v503, 0
      %v510 = vsel %vm174, %v505, 0
      %512 = vmatprep.subr.bf16.mxu0 0
      %513 = vmatpush1.bf16.xpose.msra.mxu0 0
      %514 = vmatprep.subr.bf16.mxu0 0
      %515 = vmatpush1.bf16.xpose.msra.mxu0 0
      %516 = vmatprep.subr.bf16.mxu0 0
      %517 = vmatpush1.bf16.xpose.msra.mxu0 0
      %518 = vmatprep.subr.bf16.mxu0 0
      %519 = vmatpush1.bf16.xpose.msra.mxu0 0
      %520 = vmatprep.subr.bf16.mxu0 0
      %521 = vmatpush1.bf16.xpose.msra.mxu0 0
      %522 = vmatprep.subr.bf16.mxu0 0
      %523 = vmatpush1.bf16.xpose.msra.mxu0 0
      %524 = vmatprep.subr.bf16.mxu0 0
      %525 = vmatpush1.bf16.xpose.msra.mxu0 0
      %526 = vmatprep.subr.bf16.mxu0 0
      %527 = vmatpush1.bf16.xpose.msra.mxu0 %v510
      %528 = vmatprep.subr.bf16.mxu0 0
      %529 = vmatpush2.bf16.xpose.msra.mxu0 0
      %530 = vmatprep.subr.bf16.mxu0 0
      %531 = vmatpush2.bf16.xpose.msra.mxu0 0
      %532 = vmatprep.subr.bf16.mxu0 0
      %533 = vmatpush2.bf16.xpose.msra.mxu0 0
      %534 = vmatprep.subr.bf16.mxu0 0
      %535 = vmatpush2.bf16.xpose.msra.mxu0 0
      %536 = vmatprep.subr.bf16.mxu0 0
      %537 = vmatpush2.bf16.xpose.msra.mxu0 0
      %538 = vmatprep.subr.bf16.mxu0 0
      %539 = vmatpush2.bf16.xpose.msra.mxu0 0
      %540 = vmatprep.subr.bf16.mxu0 0
      %541 = vmatpush2.bf16.xpose.msra.mxu0 0
      %542 = vmatprep.subr.bf16.mxu0 0
      %543 = vmatpush2.bf16.xpose.msra.mxu0 0
      %544 = vmatprep.mubr.bf16.mxu0 0
      %545 = vmatmul.mubr.bf16.gmra.mxu0 %v507
      %v546 = vpop.f32.mrf.mxu0
      %v547 = vadd.f32 %v163, %v546
      %v548 = vpop.f32.mrf.mxu0
      %v549 = vpop.f32.mrf.mxu0
      %v550 = vpop.f32.mrf.mxu0
      %551 = vdwg.mxu0
      %v552 = vsel %vm174, %v547, -inf
      %553 = vmax.xlane.f32.xlu0 %v552
      %v554 = vpop.xlane.xlu0 %553
      %v555 = vsub.f32 %v547, %v554
      %v556 = vmul.f32 %v555, 1.442695
      %v557 = vpow.pop %v556
      %v558 = vsel %vm174, %v557, 0.0
      %559 = vadd.xlane.f32.xlu0 %v558
      %v560 = vpop.xlane.xlu0 %559
      %v561 = vrcp.pop %v560
      %v562 = vmul.f32 %v557, %v561
      %v563 = vpack.c.bf16 %v562, %v562
      %564 = vrot.lane.b32.xlu0 %v171, 40
      %v565 = vpop.permute.xlu0 %564
      %v567 = vsel %vm174, %v563, 0
      %v570 = vsel %vm238, %v565, 0
      %572 = vmatprep.subr.bf16.mxu0 0
      %573 = vmatpush1.bf16.msra.mxu0 0
      %574 = vmatprep.subr.bf16.mxu0 0
      %575 = vmatpush1.bf16.msra.mxu0 0
      %576 = vmatprep.subr.bf16.mxu0 0
      %577 = vmatpush1.bf16.msra.mxu0 0
      %578 = vmatprep.subr.bf16.mxu0 0
      %579 = vmatpush1.bf16.msra.mxu0 0
      %580 = vmatprep.subr.bf16.mxu0 0
      %581 = vmatpush1.bf16.msra.mxu0 0
      %582 = vmatprep.subr.bf16.mxu0 0
      %583 = vmatpush1.bf16.msra.mxu0 0
      %584 = vmatprep.subr.bf16.mxu0 0
      %585 = vmatpush1.bf16.msra.mxu0 0
      %586 = vmatprep.subr.bf16.mxu0 0
      %587 = vmatpush1.bf16.msra.mxu0 %v570
      %588 = vmatprep.subr.bf16.mxu0 0
      %589 = vmatpush2.bf16.msra.mxu0 0
      %590 = vmatprep.subr.bf16.mxu0 0
      %591 = vmatpush2.bf16.msra.mxu0 0
      %592 = vmatprep.subr.bf16.mxu0 0
      %593 = vmatpush2.bf16.msra.mxu0 0
      %594 = vmatprep.subr.bf16.mxu0 0
      %595 = vmatpush2.bf16.msra.mxu0 0
      %596 = vmatprep.subr.bf16.mxu0 0
      %597 = vmatpush2.bf16.msra.mxu0 0
      %598 = vmatprep.subr.bf16.mxu0 0
      %599 = vmatpush2.bf16.msra.mxu0 0
      %600 = vmatprep.subr.bf16.mxu0 0
      %601 = vmatpush2.bf16.msra.mxu0 0
      %602 = vmatprep.subr.bf16.mxu0 0
      %603 = vmatpush2.bf16.msra.mxu0 0
      %604 = vmatprep.mubr.bf16.mxu0 0
      %605 = vmatmul.mubr.bf16.gmra.mxu0 %v567
      %v606 = vpop.f32.mrf.mxu0
      %v607 = vadd.f32 0.0, %v606
      %v608 = vpop.f32.mrf.mxu0
      %v609 = vpop.f32.mrf.mxu0
      %v610 = vpop.f32.mrf.mxu0
      %611 = vdwg.mxu0
      %613 = vrot.lane.b32.xlu0 %v387, 8
      %v614 = vpop.permute.xlu0 %613
      %617 = vrot.lane.b32.xlu0 %v497, 16
      %v618 = vpop.permute.xlu0 %617
      %621 = vrot.lane.b32.xlu0 %v607, 24
      %v622 = vpop.permute.xlu0 %621
      %v624 = vsel %vm174, %v277, %v614
      %vm625 = vcmask 130048
      %v626 = vsel %vm625, %v624, %v618
      %vm627 = vcmask 195584
      %v628 = vsel %vm627, %v626, %v622
      %v629 = vpack.c.bf16 %v628, %v628
      %s630 = smul.addr %s164, 4
      %s631 = scalar_lea.vmem [#allocation3], %s630
      %vm632 = vcmask 257024
      %633 = vst.msk [vmem:[%s631] sm:$0xf] %vm632, %v629
    $region50: #{tpu_custom_call.1} parent=1 // loop_footer
      %s154 = sadd.s32 1, %s150
    $region51: #{tpu_custom_call.1} parent=1 // loop_footer_branch
      %149 = sbr.rel target = $region47
    $region52: #{tpu_custom_call.1} parent=1 // loop_exit
      _
    %v634 = vld [vmem:[%s5] sm:$0x1]
    %v635 = vld [vmem:[%s5 + $0x1] sm:$0x1]
    %v636 = vld [vmem:[%s5 + $0x2] sm:$0x1]
    %v637 = vld [vmem:[%s5 + $0x3] sm:$0x1]
    %v638 = vld [vmem:[%s5 + $0x4] sm:$0x1]
    %v639 = vld [vmem:[%s5 + $0x5] sm:$0x1]
    %v640 = vld [vmem:[#allocation3] sm:$0xf]
    %v641 = vld [vmem:[#allocation3 + $0x4] sm:$0xf]
    %v642 = vld [vmem:[%s4] sm:$0xf]
    %v643 = vld [vmem:[%s4 + $0x4] sm:$0xf]
    %v644 = vld [vmem:[%s4 + $0x8] sm:$0xf]
    %v645 = vld [vmem:[%s4 + $0xc] sm:$0xf]
    %v646 = vlaneseq
    %v647 = vshrl.u32 %v646, 7
    %v648 = vsub.s32 0, %v647
    %v649 = vrot.slane %v634, %v648
    %v652 = vunpack.c.l.b16 %v640
    %v653 = vunpack.c.l.b16 %v641
    %v654 = vpack.c.b16 %v653, %v652
    %v659 = vunpack.c.l.b16 %v642
    %v660 = vunpack.c.l.b16 %v643
    %v661 = vunpack.c.l.b16 %v644
    %v662 = vunpack.c.l.b16 %v645
    %v663 = vpack.c.b16 %v660, %v659
    %v664 = vpack.c.b16 %v662, %v661
    %v668 = vsel %vm86, %v654, 0
    %670 = vmatprep.subr.bf16.mxu0 0
    %671 = vmatpush1.bf16.msra.mxu0 0
    %672 = vmatprep.subr.bf16.mxu0 0
    %673 = vmatpush1.bf16.msra.mxu0 0
    %674 = vmatprep.subr.bf16.mxu0 0
    %675 = vmatpush1.bf16.msra.mxu0 0
    %676 = vmatprep.subr.bf16.mxu0 0
    %677 = vmatpush1.bf16.msra.mxu0 0
    %678 = vmatprep.subr.bf16.mxu0 0
    %679 = vmatpush1.bf16.msra.mxu0 0
    %680 = vmatprep.subr.bf16.mxu0 0
    %681 = vmatpush1.bf16.msra.mxu0 0
    %682 = vmatprep.subr.bf16.mxu0 0
    %683 = vmatpush1.bf16.msra.mxu0 %v664
    %684 = vmatprep.subr.bf16.mxu0 0
    %685 = vmatpush1.bf16.msra.mxu0 %v663
    %686 = vmatprep.subr.bf16.mxu0 0
    %687 = vmatpush2.bf16.msra.mxu0 0
    %688 = vmatprep.subr.bf16.mxu0 0
    %689 = vmatpush2.bf16.msra.mxu0 0
    %690 = vmatprep.subr.bf16.mxu0 0
    %691 = vmatpush2.bf16.msra.mxu0 0
    %692 = vmatprep.subr.bf16.mxu0 0
    %693 = vmatpush2.bf16.msra.mxu0 0
    %694 = vmatprep.subr.bf16.mxu0 0
    %695 = vmatpush2.bf16.msra.mxu0 0
    %696 = vmatprep.subr.bf16.mxu0 0
    %697 = vmatpush2.bf16.msra.mxu0 0
    %698 = vmatprep.subr.bf16.mxu0 0
    %699 = vmatpush2.bf16.msra.mxu0 0
    %700 = vmatprep.subr.bf16.mxu0 0
    %701 = vmatpush2.bf16.msra.mxu0 0
    %702 = vmatprep.mubr.bf16.mxu0 0
    %703 = vmatmul.mubr.bf16.gmra.mxu0 %v668
    %v704 = vpop.f32.mrf.mxu0
    %v705 = vadd.f32 %v649, %v704
    %v706 = vpop.f32.mrf.mxu0
    %v707 = vpop.f32.mrf.mxu0
    %v708 = vadd.f32 %v649, %v707
    %v709 = vpop.f32.mrf.mxu0
    %710 = vdwg.mxu0
    %v711 = vadd.f32 %v60, %v705
    %v712 = vadd.f32 %v61, %v708
    %v713 = vsel %vm86, %v711, 0.0
    %714 = vadd.xlane.f32.xlu0 %v713
    %v715 = vpop.xlane.xlu0 %714
    %v716 = vsel %vm86, %v712, 0.0
    %717 = vadd.xlane.f32.xlu0 %v716
    %v718 = vpop.xlane.xlu0 %717
    %v719 = vrcp.pop 32.0
    %v720 = vmul.f32 %v715, %v719
    %v721 = vmul.f32 %v718, %v719
    %v722 = vsub.f32 %v711, %v720
    %v723 = vsub.f32 %v712, %v721
    %v724 = vmul.f32 %v722, %v722
    %v725 = vmul.f32 %v723, %v723
    %v726 = vsel %vm86, %v724, 0.0
    %727 = vadd.xlane.f32.xlu0 %v726
    %v728 = vpop.xlane.xlu0 %727
    %v729 = vsel %vm86, %v725, 0.0
    %730 = vadd.xlane.f32.xlu0 %v729
    %v731 = vpop.xlane.xlu0 %730
    %v732 = vmul.f32 %v728, %v719
    %v733 = vmul.f32 %v731, %v719
    %v734 = vadd.f32 %v732, 1e-05
    %v735 = vadd.f32 %v733, 1e-05
    %v736 = vrsqrt.pop %v734
    %v737 = vrsqrt.pop %v735
    %v738 = vmul.f32 %v722, %v736
    %v739 = vmul.f32 %v723, %v737
    %v740 = vlaneseq
    %v741 = vshrl.u32 %v740, 7
    %v742 = vsub.s32 0, %v741
    %v743 = vrot.slane %v635, %v742
    %v744 = vmul.f32 %v738, %v743
    %v745 = vmul.f32 %v739, %v743
    %v746 = vlaneseq
    %v747 = vshrl.u32 %v746, 7
    %v748 = vsub.s32 0, %v747
    %v749 = vrot.slane %v636, %v748
    %v750 = vadd.f32 %v744, %v749
    %v751 = vadd.f32 %v745, %v749
    %v752 = vld [vmem:[#allocation7] sm:$0xf]
    %v753 = vld [vmem:[#allocation7 + $0x4] sm:$0xf]
    %v754 = vld [vmem:[#allocation7 + $0x8] sm:$0xf]
    %v755 = vld [vmem:[#allocation7 + $0xc] sm:$0xf]
    %v756 = vpack.c.bf16 %v751, %v750
    %v757 = vld [vmem:[%s7] sm:$0x1]
    %v759 = vlaneseq
    %v760 = vshrl.u32 %v759, 7
    %v761 = vsub.s32 0, %v760
    %v762 = vrot.slane %v757, %v761
    %v768 = vunpack.c.l.b16 %v752
    %v769 = vunpack.c.l.b16 %v753
    %v770 = vunpack.c.l.b16 %v754
    %v771 = vunpack.c.l.b16 %v755
    %v772 = vpack.c.b16 %v769, %v768
    %v773 = vpack.c.b16 %v771, %v770
    %v777 = vsel %vm86, %v756, 0
    %779 = vmatprep.subr.bf16.mxu0 0
    %780 = vmatpush1.bf16.msra.mxu0 0
    %781 = vmatprep.subr.bf16.mxu0 0
    %782 = vmatpush1.bf16.msra.mxu0 0
    %783 = vmatprep.subr.bf16.mxu0 0
    %784 = vmatpush1.bf16.msra.mxu0 0
    %785 = vmatprep.subr.bf16.mxu0 0
    %786 = vmatpush1.bf16.msra.mxu0 0
    %787 = vmatprep.subr.bf16.mxu0 0
    %788 = vmatpush1.bf16.msra.mxu0 0
    %789 = vmatprep.subr.bf16.mxu0 0
    %790 = vmatpush1.bf16.msra.mxu0 0
    %791 = vmatprep.subr.bf16.mxu0 0
    %792 = vmatpush1.bf16.msra.mxu0 %v773
    %793 = vmatprep.subr.bf16.mxu0 0
    %794 = vmatpush1.bf16.msra.mxu0 %v772
    %795 = vmatprep.subr.bf16.mxu0 0
    %796 = vmatpush2.bf16.msra.mxu0 0
    %797 = vmatprep.subr.bf16.mxu0 0
    %798 = vmatpush2.bf16.msra.mxu0 0
    %799 = vmatprep.subr.bf16.mxu0 0
    %800 = vmatpush2.bf16.msra.mxu0 0
    %801 = vmatprep.subr.bf16.mxu0 0
    %802 = vmatpush2.bf16.msra.mxu0 0
    %803 = vmatprep.subr.bf16.mxu0 0
    %804 = vmatpush2.bf16.msra.mxu0 0
    %805 = vmatprep.subr.bf16.mxu0 0
    %806 = vmatpush2.bf16.msra.mxu0 0
    %807 = vmatprep.subr.bf16.mxu0 0
    %808 = vmatpush2.bf16.msra.mxu0 0
    %809 = vmatprep.subr.bf16.mxu0 0
    %810 = vmatpush2.bf16.msra.mxu0 0
    %811 = vmatprep.mubr.bf16.mxu0 0
    %812 = vmatmul.mubr.bf16.gmra.mxu0 %v777
    %v813 = vpop.f32.mrf.mxu0
    %v814 = vadd.f32 %v762, %v813
    %v815 = vpop.f32.mrf.mxu0
    %v816 = vpop.f32.mrf.mxu0
    %v817 = vadd.f32 %v762, %v816
    %v818 = vpop.f32.mrf.mxu0
    %819 = vdwg.mxu0
    %v820 = vmax.f32 %v814, 0.0
    %v821 = vmax.f32 %v817, 0.0
    %v822 = vld [vmem:[%s8] sm:$0xf]
    %v823 = vld [vmem:[%s8 + $0x4] sm:$0xf]
    %v824 = vld [vmem:[%s8 + $0x8] sm:$0xf]
    %v825 = vld [vmem:[%s8 + $0xc] sm:$0xf]
    %v826 = vld [vmem:[%s8 + $0x10] sm:$0xf]
    %v827 = vld [vmem:[%s8 + $0x14] sm:$0xf]
    %v828 = vld [vmem:[%s8 + $0x18] sm:$0xf]
    %v829 = vld [vmem:[%s8 + $0x1c] sm:$0xf]
    %v830 = vpack.c.bf16 %v821, %v820
    %v831 = vlaneseq
    %v832 = vshrl.u32 %v831, 7
    %v833 = vsub.s32 0, %v832
    %v834 = vrot.slane %v637, %v833
    %v843 = vunpack.c.l.b16 %v822
    %v844 = vunpack.c.l.b16 %v823
    %v845 = vunpack.c.l.b16 %v824
    %v846 = vunpack.c.l.b16 %v825
    %v847 = vunpack.c.l.b16 %v826
    %v848 = vunpack.c.l.b16 %v827
    %v849 = vunpack.c.l.b16 %v828
    %v850 = vunpack.c.l.b16 %v829
    %v851 = vpack.c.b16 %v844, %v843
    %v852 = vpack.c.b16 %v846, %v845
    %v853 = vpack.c.b16 %v848, %v847
    %v854 = vpack.c.b16 %v850, %v849
    %vm859 = vcmask 523264
    %v861 = vsel %vm859, %v830, 0
    %863 = vmatprep.subr.bf16.mxu0 0
    %864 = vmatpush1.bf16.msra.mxu0 0
    %865 = vmatprep.subr.bf16.mxu0 0
    %866 = vmatpush1.bf16.msra.mxu0 0
    %867 = vmatprep.subr.bf16.mxu0 0
    %868 = vmatpush1.bf16.msra.mxu0 0
    %869 = vmatprep.subr.bf16.mxu0 0
    %870 = vmatpush1.bf16.msra.mxu0 0
    %871 = vmatprep.subr.bf16.mxu0 0
    %872 = vmatpush1.bf16.msra.mxu0 %v854
    %873 = vmatprep.subr.bf16.mxu0 0
    %874 = vmatpush1.bf16.msra.mxu0 %v853
    %875 = vmatprep.subr.bf16.mxu0 0
    %876 = vmatpush1.bf16.msra.mxu0 %v852
    %877 = vmatprep.subr.bf16.mxu0 0
    %878 = vmatpush1.bf16.msra.mxu0 %v851
    %879 = vmatprep.subr.bf16.mxu0 0
    %880 = vmatpush2.bf16.msra.mxu0 0
    %881 = vmatprep.subr.bf16.mxu0 0
    %882 = vmatpush2.bf16.msra.mxu0 0
    %883 = vmatprep.subr.bf16.mxu0 0
    %884 = vmatpush2.bf16.msra.mxu0 0
    %885 = vmatprep.subr.bf16.mxu0 0
    %886 = vmatpush2.bf16.msra.mxu0 0
    %887 = vmatprep.subr.bf16.mxu0 0
    %888 = vmatpush2.bf16.msra.mxu0 0
    %889 = vmatprep.subr.bf16.mxu0 0
    %890 = vmatpush2.bf16.msra.mxu0 0
    %891 = vmatprep.subr.bf16.mxu0 0
    %892 = vmatpush2.bf16.msra.mxu0 0
    %893 = vmatprep.subr.bf16.mxu0 0
    %894 = vmatpush2.bf16.msra.mxu0 0
    %895 = vmatprep.mubr.bf16.mxu0 0
    %896 = vmatmul.mubr.bf16.gmra.mxu0 %v861
    %v897 = vpop.f32.mrf.mxu0
    %v898 = vadd.f32 %v834, %v897
    %v899 = vpop.f32.mrf.mxu0
    %v900 = vpop.f32.mrf.mxu0
    %v901 = vadd.f32 %v834, %v900
    %v902 = vpop.f32.mrf.mxu0
    %903 = vdwg.mxu0
    %v904 = vadd.f32 %v750, %v898
    %v905 = vadd.f32 %v751, %v901
    %v906 = vsel %vm86, %v904, 0.0
    %907 = vadd.xlane.f32.xlu0 %v906
    %v908 = vpop.xlane.xlu0 %907
    %v909 = vsel %vm86, %v905, 0.0
    %910 = vadd.xlane.f32.xlu0 %v909
    %v911 = vpop.xlane.xlu0 %910
    %v912 = vmul.f32 %v908, %v719
    %v913 = vmul.f32 %v911, %v719
    %v914 = vsub.f32 %v904, %v912
    %v915 = vsub.f32 %v905, %v913
    %v916 = vmul.f32 %v914, %v914
    %v917 = vmul.f32 %v915, %v915
    %v918 = vsel %vm86, %v916, 0.0
    %919 = vadd.xlane.f32.xlu0 %v918
    %v920 = vpop.xlane.xlu0 %919
    %v921 = vsel %vm86, %v917, 0.0
    %922 = vadd.xlane.f32.xlu0 %v921
    %v923 = vpop.xlane.xlu0 %922
    %v924 = vmul.f32 %v920, %v719
    %v925 = vmul.f32 %v923, %v719
    %v926 = vadd.f32 %v924, 1e-05
    %v927 = vadd.f32 %v925, 1e-05
    %v928 = vrsqrt.pop %v926
    %v929 = vrsqrt.pop %v927
    %v930 = vmul.f32 %v914, %v928
    %v931 = vmul.f32 %v915, %v929
    %v932 = vlaneseq
    %v933 = vshrl.u32 %v932, 7
    %v934 = vsub.s32 0, %v933
    %v935 = vrot.slane %v638, %v934
    %v936 = vmul.f32 %v930, %v935
    %v937 = vmul.f32 %v931, %v935
    %v938 = vlaneseq
    %v939 = vshrl.u32 %v938, 7
    %v940 = vsub.s32 0, %v939
    %v941 = vrot.slane %v639, %v940
    %v942 = vadd.f32 %v936, %v941
    %v943 = vadd.f32 %v937, %v941
    %944 = vst.msk [vmem:[#allocation9] sm:$0xff] %vm86, %v942
    %945 = vst.msk [vmem:[#allocation9 + $0x8] sm:$0xff] %vm86, %v943
    // Predicated region
    $region53: #{tpu_custom_call.1} parent=1 // pred_check
      _
    $region54: #{tpu_custom_call.1} parent=1 // pred_check_branch
      %947 = sbr.rel (0) target = $region56
    $region55: #{tpu_custom_call.1} parent=1 // pred_region
      %s949 = ssub.s32 256, 256
      %950 = vsyncadd [#allocation6], %s949
      %s951 = sshll.u32 [#allocation9], 4
      %s952 = int_to_ptr.vmem [resolvable:$true] %s951
      %957 = dma.vmem_to_hbm [thread:$0]  %s952, 256, %s9, [#allocation6], 128, 128, 8
    $region56: #{tpu_custom_call.1} parent=1 // pred_fallthru
      _
    // Predicated region
    $region57: #{tpu_custom_call.1} parent=1 // pred_check
      _
    $region58: #{tpu_custom_call.1} parent=1 // pred_check_branch
      %959 = sbr.rel (0) target = $region60
    $region59: #{tpu_custom_call.1} parent=1 // pred_region
      %960 = dma.done [#allocation6], 256
    $region60: #{tpu_custom_call.1} parent=1 // pred_fallthru
      _
    %961 = vsyncpa [#allocation5], 1
    %962 = vsyncpa [#allocation8], 1
    %963 = vsyncpa [#allocation6], 1

</llo_original>
